<compile_context>
chip_gen: v6e
topology: v6e:2x2x1
jax: 0.10.0
libtpu: 0.0.40
codegen_flags: <defaults>
</compile_context>

<pallas_src>
import jax
import jax.numpy as jnp
from jax.experimental import pallas as pl
from jax.experimental.pallas import tpu as pltpu

LEN_OP = 10

# true (unpadded) layer dims
DIMS = [201, 512, 512, 256, 128, 64, LEN_OP]


def _pad_to(n, m):
    return ((n + m - 1) // m) * m


# padded feature dims (multiples of 128)
PDIMS = [_pad_to(d, 128) for d in DIMS]   # [256, 512, 512, 256, 128, 128, 128]

# Max batch tile: 256 rows per grid step.
MAX_TB = 256


def ann_hist_kernel(x_ref,
                    w1_ref, b1_ref, w2_ref, b2_ref, w3_ref, b3_ref,
                    w4_ref, b4_ref, w5_ref, b5_ref, w6_ref, b6_ref,
                    out_ref):
    """One (TB, .) batch tile: full 6-layer MLP + masked log_softmax."""
    h = x_ref[...]                                   # bf16 (TB, 256)

    def dense_relu(h_bf16, w_ref, b_ref):
        # bf16 x bf16 matmul with f32 accumulation on the MXU.
        y = jnp.dot(h_bf16, w_ref[...], preferred_element_type=jnp.float32)
        return jnp.maximum(y + b_ref[...], 0.0)      # bias add + ReLU in f32

    h = dense_relu(h, w1_ref, b1_ref).astype(jnp.bfloat16)   # fc1 + relu
    h = dense_relu(h, w2_ref, b2_ref).astype(jnp.bfloat16)   # fc2 + relu
    h = dense_relu(h, w3_ref, b3_ref).astype(jnp.bfloat16)   # fc3 + relu
    # dropout (eval mode) == identity
    h = dense_relu(h, w4_ref, b4_ref).astype(jnp.bfloat16)   # fc4 + relu
    h = dense_relu(h, w5_ref, b5_ref).astype(jnp.bfloat16)   # fc5 + relu
    h = dense_relu(h, w6_ref, b6_ref)                        # fc6 + relu (f32 logits)

    # log_softmax over dim=1 restricted to the first LEN_OP (valid) lanes.
    lane = jax.lax.broadcasted_iota(jnp.int32, h.shape, dimension=1)
    neg_inf = jnp.float32(-1e30)
    masked = jnp.where(lane < LEN_OP, h, neg_inf)
    m = jnp.max(masked, axis=1, keepdims=True)
    lse = jnp.log(jnp.sum(jnp.exp(masked - m), axis=1, keepdims=True)) + m
    out_ref[...] = masked - lse                      # padded lanes = junk; sliced off


def init_params(key):
    """PyTorch-Linear-style init U(-1/sqrt(fan_in), 1/sqrt(fan_in)).

    Weights stored (in, out) in bf16, zero-padded to PDIMS; biases in f32.
    """
    params = []
    keys = jax.random.split(key, len(DIMS) - 1)
    for li in range(len(DIMS) - 1):
        d_in, d_out = DIMS[li], DIMS[li + 1]
        p_in, p_out = PDIMS[li], PDIMS[li + 1]
        kw, kb = jax.random.split(keys[li])
        bound = 1.0 / (d_in ** 0.5)
        w = jax.random.uniform(kw, (d_in, d_out), jnp.float32, -bound, bound)
        b = jax.random.uniform(kb, (d_out,), jnp.float32, -bound, bound)
        w_p = jnp.zeros((p_in, p_out), jnp.bfloat16).at[:d_in, :d_out].set(
            w.astype(jnp.bfloat16))
        b_p = jnp.zeros((1, p_out), jnp.float32).at[0, :d_out].set(b)
        params.append((w_p, b_p))
    return params


@jax.jit
def ann_hist_forward(x, params):
    """x: (B, 201) float32 -> (B, LEN_OP) log-probabilities."""
    b, f = x.shape
    assert f == DIMS[0]

    # batch tile: multiple of 8; cap at MAX_TB, grid over batch.
    tb = min(MAX_TB, _pad_to(b, 8))
    b_pad = _pad_to(b, tb)
    grid = (b_pad // tb,)

    x_p = jnp.zeros((b_pad, PDIMS[0]), jnp.bfloat16).at[:b, :f].set(
        x.astype(jnp.bfloat16))

    flat_params = []
    for w, bias in params:
        flat_params.extend([w, bias])

    # x / out tile over the batch grid; weights & biases use a constant block
    # index so they stay VMEM-resident across all grid steps.
    x_spec = pl.BlockSpec((tb, PDIMS[0]), lambda i: (i, 0))
    param_specs = [pl.BlockSpec(p.shape, lambda i: (0, 0)) for p in flat_params]
    out_spec = pl.BlockSpec((tb, PDIMS[-1]), lambda i: (i, 0))

    weight_bytes = sum(int(p.size) * p.dtype.itemsize for p in flat_params)
    flops = 2 * b_pad * sum(PDIMS[i] * PDIMS[i + 1] for i in range(len(PDIMS) - 1))
    cost = pl.CostEstimate(
        flops=flops,
        transcendentals=b_pad * PDIMS[-1],                     # exp in log_softmax
        bytes_accessed=weight_bytes + int(x_p.size) * 2 + b_pad * PDIMS[-1] * 4,
    )

    out = pl.pallas_call(
        ann_hist_kernel,
        out_shape=jax.ShapeDtypeStruct((b_pad, PDIMS[-1]), jnp.float32),
        grid=grid,
        in_specs=[x_spec] + param_specs,
        out_specs=out_spec,
        compiler_params=pltpu.CompilerParams(
            dimension_semantics=("parallel",)),
        cost_estimate=cost,
    )(x_p, *flat_params)

    return out[:b, :LEN_OP]


def reference_forward(x, params):
    """Pure-JAX reference mirroring the kernel's bf16/f32 dtype pipeline."""
    h = x.astype(jnp.bfloat16)
    n = len(params)
    for li, (w, bias) in enumerate(params):
        d_in, d_out = DIMS[li], DIMS[li + 1]
        y = jnp.dot(h, w[:d_in, :d_out],
                    preferred_element_type=jnp.float32) + bias[0, :d_out]
        h = jnp.maximum(y, 0.0)
        if li < n - 1:
            h = h.astype(jnp.bfloat16)
    return jax.nn.log_softmax(h, axis=1)


if __name__ == "__main__":
    key = jax.random.PRNGKey(0)
    k_x, k_p = jax.random.split(key)

    params = init_params(k_p)

    # small batch (single tiny tile)
    batch = 2
    x = jax.random.normal(k_x, (batch, DIMS[0]), jnp.float32)
    out = jax.block_until_ready(ann_hist_forward(x, params))
    ref = reference_forward(x, params)
    assert out.shape == (batch, LEN_OP)
    assert jnp.allclose(out, ref, atol=1e-2, rtol=1e-2), (
        f"max abs err = {jnp.max(jnp.abs(out - ref))}")

    # larger batch exercising multiple grid steps (grid=(3,), padded 600->768)
    batch2 = 600
    x2 = jax.random.normal(k_x, (batch2, DIMS[0]), jnp.float32)
    out2 = jax.block_until_ready(ann_hist_forward(x2, params))
    ref2 = reference_forward(x2, params)
    assert out2.shape == (batch2, LEN_OP)
    assert jnp.allclose(out2, ref2, atol=1e-2, rtol=1e-2), (
        f"max abs err = {jnp.max(jnp.abs(out2 - ref2))}")

    print("KERNEL_OK")
</pallas_src>

<mosaic_0001>
module attributes {stable_mosaic.version = 11 : i64} {
  func.func @ann_hist_kernel(%arg0: i32, %arg1: memref<8x256xbf16, #tpu.memory_space<vmem>>, %arg2: memref<256x512xbf16, #tpu.memory_space<vmem>>, %arg3: memref<1x512xf32, #tpu.memory_space<vmem>>, %arg4: memref<512x512xbf16, #tpu.memory_space<vmem>>, %arg5: memref<1x512xf32, #tpu.memory_space<vmem>>, %arg6: memref<512x256xbf16, #tpu.memory_space<vmem>>, %arg7: memref<1x256xf32, #tpu.memory_space<vmem>>, %arg8: memref<256x128xbf16, #tpu.memory_space<vmem>>, %arg9: memref<1x128xf32, #tpu.memory_space<vmem>>, %arg10: memref<128x128xbf16, #tpu.memory_space<vmem>>, %arg11: memref<1x128xf32, #tpu.memory_space<vmem>>, %arg12: memref<128x128xbf16, #tpu.memory_space<vmem>>, %arg13: memref<1x128xf32, #tpu.memory_space<vmem>>, %arg14: memref<8x128xf32, #tpu.memory_space<vmem>>) attributes {dimension_semantics = [#tpu.dimension_semantics<parallel>], iteration_bounds = array<i64: 1>, scalar_prefetch = 0 : i64, scratch_operands = 0 : i64, tpu.core_type = #tpu.core_type<tc>, window_params = [{transform_indices = @transform_0, window_bounds = array<i64: 8, 256>}, {pipeline_mode = #tpu.pipeline_mode<synchronous>, transform_indices = @transform_1, window_bounds = array<i64: 256, 512>}, {pipeline_mode = #tpu.pipeline_mode<synchronous>, transform_indices = @transform_2, window_bounds = array<i64: 1, 512>}, {pipeline_mode = #tpu.pipeline_mode<synchronous>, transform_indices = @transform_3, window_bounds = array<i64: 512, 512>}, {pipeline_mode = #tpu.pipeline_mode<synchronous>, transform_indices = @transform_4, window_bounds = array<i64: 1, 512>}, {pipeline_mode = #tpu.pipeline_mode<synchronous>, transform_indices = @transform_5, window_bounds = array<i64: 512, 256>}, {pipeline_mode = #tpu.pipeline_mode<synchronous>, transform_indices = @transform_6, window_bounds = array<i64: 1, 256>}, {pipeline_mode = #tpu.pipeline_mode<synchronous>, transform_indices = @transform_7, window_bounds = array<i64: 256, 128>}, {pipeline_mode = #tpu.pipeline_mode<synchronous>, transform_indices = @transform_8, window_bounds = array<i64: 1, 128>}, {pipeline_mode = #tpu.pipeline_mode<synchronous>, transform_indices = @transform_9, window_bounds = array<i64: 128, 128>}, {pipeline_mode = #tpu.pipeline_mode<synchronous>, transform_indices = @transform_10, window_bounds = array<i64: 1, 128>}, {pipeline_mode = #tpu.pipeline_mode<synchronous>, transform_indices = @transform_11, window_bounds = array<i64: 128, 128>}, {pipeline_mode = #tpu.pipeline_mode<synchronous>, transform_indices = @transform_12, window_bounds = array<i64: 1, 128>}, {transform_indices = @transform_13, window_bounds = array<i64: 8, 128>}]} {
    %c0 = arith.constant 0 : index
    %c0_0 = arith.constant 0 : index
    %0 = vector.load %arg1[%c0, %c0_0] : memref<8x256xbf16, #tpu.memory_space<vmem>>, vector<8x256xbf16>
    %c0_1 = arith.constant 0 : index
    %c0_2 = arith.constant 0 : index
    %1 = vector.load %arg2[%c0_1, %c0_2] : memref<256x512xbf16, #tpu.memory_space<vmem>>, vector<256x512xbf16>
    %cst = arith.constant dense<0.000000e+00> : vector<8x512xf32>
    %2 = tpu.matmul %0, %1, %cst {dimension_numbers = #tpu.dot_dimension_numbers<[1], [0], [0], [1], [0, 0, 1, 1], [], []>} : vector<8x256xbf16>, vector<256x512xbf16>, vector<8x512xf32> -> vector<8x512xf32>
    %c0_3 = arith.constant 0 : index
    %c0_4 = arith.constant 0 : index
    %3 = vector.load %arg3[%c0_3, %c0_4] : memref<1x512xf32, #tpu.memory_space<vmem>>, vector<1x512xf32>
    %4 = vector.broadcast %3 : vector<1x512xf32> to vector<8x512xf32>
    %5 = arith.addf %2, %4 : vector<8x512xf32>
    %cst_5 = arith.constant 0.000000e+00 : f32
    %6 = vector.broadcast %cst_5 : f32 to vector<8x512xf32>
    %7 = arith.maximumf %5, %6 : vector<8x512xf32>
    %8 = arith.truncf %7 : vector<8x512xf32> to vector<8x512xbf16>
    %c0_6 = arith.constant 0 : index
    %c0_7 = arith.constant 0 : index
    %9 = vector.load %arg4[%c0_6, %c0_7] : memref<512x512xbf16, #tpu.memory_space<vmem>>, vector<512x512xbf16>
    %cst_8 = arith.constant dense<0.000000e+00> : vector<8x512xf32>
    %10 = tpu.matmul %8, %9, %cst_8 {dimension_numbers = #tpu.dot_dimension_numbers<[1], [0], [0], [1], [0, 0, 1, 1], [], []>} : vector<8x512xbf16>, vector<512x512xbf16>, vector<8x512xf32> -> vector<8x512xf32>
    %c0_9 = arith.constant 0 : index
    %c0_10 = arith.constant 0 : index
    %11 = vector.load %arg5[%c0_9, %c0_10] : memref<1x512xf32, #tpu.memory_space<vmem>>, vector<1x512xf32>
    %12 = vector.broadcast %11 : vector<1x512xf32> to vector<8x512xf32>
    %13 = arith.addf %10, %12 : vector<8x512xf32>
    %cst_11 = arith.constant 0.000000e+00 : f32
    %14 = vector.broadcast %cst_11 : f32 to vector<8x512xf32>
    %15 = arith.maximumf %13, %14 : vector<8x512xf32>
    %16 = arith.truncf %15 : vector<8x512xf32> to vector<8x512xbf16>
    %c0_12 = arith.constant 0 : index
    %c0_13 = arith.constant 0 : index
    %17 = vector.load %arg6[%c0_12, %c0_13] : memref<512x256xbf16, #tpu.memory_space<vmem>>, vector<512x256xbf16>
    %cst_14 = arith.constant dense<0.000000e+00> : vector<8x256xf32>
    %18 = tpu.matmul %16, %17, %cst_14 {dimension_numbers = #tpu.dot_dimension_numbers<[1], [0], [0], [1], [0, 0, 1, 1], [], []>} : vector<8x512xbf16>, vector<512x256xbf16>, vector<8x256xf32> -> vector<8x256xf32>
    %c0_15 = arith.constant 0 : index
    %c0_16 = arith.constant 0 : index
    %19 = vector.load %arg7[%c0_15, %c0_16] : memref<1x256xf32, #tpu.memory_space<vmem>>, vector<1x256xf32>
    %20 = vector.broadcast %19 : vector<1x256xf32> to vector<8x256xf32>
    %21 = arith.addf %18, %20 : vector<8x256xf32>
    %cst_17 = arith.constant 0.000000e+00 : f32
    %22 = vector.broadcast %cst_17 : f32 to vector<8x256xf32>
    %23 = arith.maximumf %21, %22 : vector<8x256xf32>
    %24 = arith.truncf %23 : vector<8x256xf32> to vector<8x256xbf16>
    %c0_18 = arith.constant 0 : index
    %c0_19 = arith.constant 0 : index
    %25 = vector.load %arg8[%c0_18, %c0_19] : memref<256x128xbf16, #tpu.memory_space<vmem>>, vector<256x128xbf16>
    %cst_20 = arith.constant dense<0.000000e+00> : vector<8x128xf32>
    %26 = tpu.matmul %24, %25, %cst_20 {dimension_numbers = #tpu.dot_dimension_numbers<[1], [0], [0], [1], [0, 0, 1, 1], [], []>} : vector<8x256xbf16>, vector<256x128xbf16>, vector<8x128xf32> -> vector<8x128xf32>
    %c0_21 = arith.constant 0 : index
    %c0_22 = arith.constant 0 : index
    %27 = vector.load %arg9[%c0_21, %c0_22] : memref<1x128xf32, #tpu.memory_space<vmem>>, vector<1x128xf32>
    %28 = vector.broadcast %27 : vector<1x128xf32> to vector<8x128xf32>
    %29 = arith.addf %26, %28 : vector<8x128xf32>
    %cst_23 = arith.constant 0.000000e+00 : f32
    %30 = vector.broadcast %cst_23 : f32 to vector<8x128xf32>
    %31 = arith.maximumf %29, %30 : vector<8x128xf32>
    %32 = arith.truncf %31 : vector<8x128xf32> to vector<8x128xbf16>
    %c0_24 = arith.constant 0 : index
    %c0_25 = arith.constant 0 : index
    %33 = vector.load %arg10[%c0_24, %c0_25] : memref<128x128xbf16, #tpu.memory_space<vmem>>, vector<128x128xbf16>
    %cst_26 = arith.constant dense<0.000000e+00> : vector<8x128xf32>
    %34 = tpu.matmul %32, %33, %cst_26 {dimension_numbers = #tpu.dot_dimension_numbers<[1], [0], [0], [1], [0, 0, 1, 1], [], []>} : vector<8x128xbf16>, vector<128x128xbf16>, vector<8x128xf32> -> vector<8x128xf32>
    %c0_27 = arith.constant 0 : index
    %c0_28 = arith.constant 0 : index
    %35 = vector.load %arg11[%c0_27, %c0_28] : memref<1x128xf32, #tpu.memory_space<vmem>>, vector<1x128xf32>
    %36 = vector.broadcast %35 : vector<1x128xf32> to vector<8x128xf32>
    %37 = arith.addf %34, %36 : vector<8x128xf32>
    %cst_29 = arith.constant 0.000000e+00 : f32
    %38 = vector.broadcast %cst_29 : f32 to vector<8x128xf32>
    %39 = arith.maximumf %37, %38 : vector<8x128xf32>
    %40 = arith.truncf %39 : vector<8x128xf32> to vector<8x128xbf16>
    %c0_30 = arith.constant 0 : index
    %c0_31 = arith.constant 0 : index
    %41 = vector.load %arg12[%c0_30, %c0_31] : memref<128x128xbf16, #tpu.memory_space<vmem>>, vector<128x128xbf16>
    %cst_32 = arith.constant dense<0.000000e+00> : vector<8x128xf32>
    %42 = tpu.matmul %40, %41, %cst_32 {dimension_numbers = #tpu.dot_dimension_numbers<[1], [0], [0], [1], [0, 0, 1, 1], [], []>} : vector<8x128xbf16>, vector<128x128xbf16>, vector<8x128xf32> -> vector<8x128xf32>
    %c0_33 = arith.constant 0 : index
    %c0_34 = arith.constant 0 : index
    %43 = vector.load %arg13[%c0_33, %c0_34] : memref<1x128xf32, #tpu.memory_space<vmem>>, vector<1x128xf32>
    %44 = vector.broadcast %43 : vector<1x128xf32> to vector<8x128xf32>
    %45 = arith.addf %42, %44 : vector<8x128xf32>
    %cst_35 = arith.constant 0.000000e+00 : f32
    %46 = vector.broadcast %cst_35 : f32 to vector<8x128xf32>
    %47 = arith.maximumf %45, %46 : vector<8x128xf32>
    %48 = tpu.iota {dimensions = array<i32: 1>} : vector<8x128xi32>
    %c10_i32 = arith.constant 10 : i32
    %49 = vector.broadcast %c10_i32 : i32 to vector<8x128xi32>
    %50 = arith.cmpi slt, %48, %49 : vector<8x128xi32>
    %cst_36 = arith.constant -1.000000e+30 : f32
    %51 = vector.broadcast %cst_36 : f32 to vector<8x128xf32>
    %52 = arith.select %50, %47, %51 : vector<8x128xi1>, vector<8x128xf32>
    %cst_37 = arith.constant dense<0xFF800000> : vector<8xf32>
    %53 = vector.multi_reduction <maximumf>, %52, %cst_37 [1] : vector<8x128xf32> to vector<8xf32>
    %54 = vector.shape_cast %53 : vector<8xf32> to vector<8x1xf32>
    %55 = vector.broadcast %54 : vector<8x1xf32> to vector<8x128xf32>
    %56 = arith.subf %52, %55 : vector<8x128xf32>
    %57 = math.exp %56 : vector<8x128xf32>
    %cst_38 = arith.constant dense<0.000000e+00> : vector<8xf32>
    %58 = vector.multi_reduction <add>, %57, %cst_38 [1] : vector<8x128xf32> to vector<8xf32>
    %59 = vector.shape_cast %58 : vector<8xf32> to vector<8x1xf32>
    %60 = math.log %59 : vector<8x1xf32>
    %61 = arith.addf %60, %54 : vector<8x1xf32>
    %62 = vector.broadcast %61 : vector<8x1xf32> to vector<8x128xf32>
    %63 = arith.subf %52, %62 : vector<8x128xf32>
    %c0_39 = arith.constant 0 : index
    %c0_40 = arith.constant 0 : index
    %64 = vector.load %arg14[%c0_39, %c0_40] : memref<8x128xf32, #tpu.memory_space<vmem>>, vector<8x128xf32>
    tpu.vector_store %arg14[%c0_39, %c0_40], %63 {strides = array<i32>} : memref<8x128xf32, #tpu.memory_space<vmem>>, vector<8x128xf32>,
    return
  }
  func.func @transform_0(%arg0: i32) -> (i32, i32) {
    %c0_i32 = arith.constant 0 : i32
    %c0_i32_0 = arith.constant 0 : i32
    return %arg0, %c0_i32 : i32, i32
  }
  func.func @transform_1(%arg0: i32) -> (i32, i32) {
    %c0_i32 = arith.constant 0 : i32
    %c0_i32_0 = arith.constant 0 : i32
    %c0_i32_1 = arith.constant 0 : i32
    return %c0_i32, %c0_i32_0 : i32, i32
  }
  func.func @transform_2(%arg0: i32) -> (i32, i32) {
    %c0_i32 = arith.constant 0 : i32
    %c0_i32_0 = arith.constant 0 : i32
    %c0_i32_1 = arith.constant 0 : i32
    return %c0_i32, %c0_i32_0 : i32, i32
  }
  func.func @transform_3(%arg0: i32) -> (i32, i32) {
    %c0_i32 = arith.constant 0 : i32
    %c0_i32_0 = arith.constant 0 : i32
    %c0_i32_1 = arith.constant 0 : i32
    return %c0_i32, %c0_i32_0 : i32, i32
  }
  func.func @transform_4(%arg0: i32) -> (i32, i32) {
    %c0_i32 = arith.constant 0 : i32
    %c0_i32_0 = arith.constant 0 : i32
    %c0_i32_1 = arith.constant 0 : i32
    return %c0_i32, %c0_i32_0 : i32, i32
  }
  func.func @transform_5(%arg0: i32) -> (i32, i32) {
    %c0_i32 = arith.constant 0 : i32
    %c0_i32_0 = arith.constant 0 : i32
    %c0_i32_1 = arith.constant 0 : i32
    return %c0_i32, %c0_i32_0 : i32, i32
  }
  func.func @transform_6(%arg0: i32) -> (i32, i32) {
    %c0_i32 = arith.constant 0 : i32
    %c0_i32_0 = arith.constant 0 : i32
    %c0_i32_1 = arith.constant 0 : i32
    return %c0_i32, %c0_i32_0 : i32, i32
  }
  func.func @transform_7(%arg0: i32) -> (i32, i32) {
    %c0_i32 = arith.constant 0 : i32
    %c0_i32_0 = arith.constant 0 : i32
    %c0_i32_1 = arith.constant 0 : i32
    return %c0_i32, %c0_i32_0 : i32, i32
  }
  func.func @transform_8(%arg0: i32) -> (i32, i32) {
    %c0_i32 = arith.constant 0 : i32
    %c0_i32_0 = arith.constant 0 : i32
    %c0_i32_1 = arith.constant 0 : i32
    return %c0_i32, %c0_i32_0 : i32, i32
  }
  func.func @transform_9(%arg0: i32) -> (i32, i32) {
    %c0_i32 = arith.constant 0 : i32
    %c0_i32_0 = arith.constant 0 : i32
    %c0_i32_1 = arith.constant 0 : i32
    return %c0_i32, %c0_i32_0 : i32, i32
  }
  func.func @transform_10(%arg0: i32) -> (i32, i32) {
    %c0_i32 = arith.constant 0 : i32
    %c0_i32_0 = arith.constant 0 : i32
    %c0_i32_1 = arith.constant 0 : i32
    return %c0_i32, %c0_i32_0 : i32, i32
  }
  func.func @transform_11(%arg0: i32) -> (i32, i32) {
    %c0_i32 = arith.constant 0 : i32
    %c0_i32_0 = arith.constant 0 : i32
    %c0_i32_1 = arith.constant 0 : i32
    return %c0_i32, %c0_i32_0 : i32, i32
  }
  func.func @transform_12(%arg0: i32) -> (i32, i32) {
    %c0_i32 = arith.constant 0 : i32
    %c0_i32_0 = arith.constant 0 : i32
    %c0_i32_1 = arith.constant 0 : i32
    return %c0_i32, %c0_i32_0 : i32, i32
  }
  func.func @transform_13(%arg0: i32) -> (i32, i32) {
    %c0_i32 = arith.constant 0 : i32
    %c0_i32_0 = arith.constant 0 : i32
    return %arg0, %c0_i32 : i32, i32
  }
}

</mosaic_0001>

<llo_original>
// kernel: ann_hist_forward.1
$region0: #{ann_hist_forward.1}
  #allocation0 [shape = 'u32[]', space=smem, size = 0x4, offset = 0x4, fixed_abs, tag = 'smem constant byte address 0x4 - core index']
  #allocation1 [shape = 'u32[144,128]{1,0:T(1,128)}', space=vmem, size = 0x12000, scoped, tag = 'internal scratch']
  %s0 = inlined_call_operand.vmem [shape: bf16[8,256], index: 0, kind: input, shape index: {}]
  %s1 = inlined_call_operand.hbm [shape: bf16[256,512], index: 1, kind: input, shape index: {}]
  %s2 = inlined_call_operand.vmem [shape: f32[1,512], index: 2, kind: input, shape index: {}]
  %s3 = inlined_call_operand.hbm [shape: bf16[512,512], index: 3, kind: input, shape index: {}]
  %s4 = inlined_call_operand.vmem [shape: f32[1,512], index: 4, kind: input, shape index: {}]
  %s5 = inlined_call_operand.hbm [shape: bf16[512,256], index: 5, kind: input, shape index: {}]
  %s6 = inlined_call_operand.vmem [shape: f32[1,256], index: 6, kind: input, shape index: {}]
  %s7 = inlined_call_operand.hbm [shape: bf16[256,128], index: 7, kind: input, shape index: {}]
  %s8 = inlined_call_operand.vmem [shape: f32[1,128], index: 8, kind: input, shape index: {}]
  %s9 = inlined_call_operand.hbm [shape: bf16[128,128], index: 9, kind: input, shape index: {}]
  %s10 = inlined_call_operand.vmem [shape: f32[1,128], index: 10, kind: input, shape index: {}]
  %s11 = inlined_call_operand.hbm [shape: bf16[128,128], index: 11, kind: input, shape index: {}]
  %s12 = inlined_call_operand.vmem [shape: f32[1,128], index: 12, kind: input, shape index: {}]
  %s13 = inlined_call_operand.vmem [shape: f32[8,128], index: 13, kind: output, shape index: {}]
  %s14 = sld [smem:[#allocation0]]
  $region86: #{ann_hist_forward.1} parent=0
    _
  %s16 = ssub.s32 1, %s14
  %s17 = scalar_select 0, %s16, %s14
  $region1: #{ann_hist_forward.1} parent=0
    #allocation2 [shape = 'u8[262144]{0}', space=vmem, size = 0x40000, scoped, tag = 'input window, operand 1, single buffered']
    #allocation3 [shape = 's32[1]{0}', space=sflag, size = 0x4, scoped, tag = 'scoped memory for ann_hist_forward.1']
    #allocation4 [shape = 'u8[524288]{0}', space=vmem, size = 0x80000, scoped, tag = 'input window, operand 3, single buffered']
    #allocation5 [shape = 's32[1]{0}', space=sflag, size = 0x4, scoped, tag = 'scoped memory for ann_hist_forward.1']
    #allocation6 [shape = 'u8[262144]{0}', space=vmem, size = 0x40000, scoped, tag = 'input window, operand 5, single buffered']
    #allocation7 [shape = 'u8[65536]{0}', space=vmem, size = 0x10000, scoped, tag = 'input window, operand 7, single buffered']
    #allocation8 [shape = 's32[1]{0}', space=sflag, size = 0x4, scoped, tag = 'scoped memory for ann_hist_forward.1']
    #allocation9 [shape = 'u8[32768]{0}', space=vmem, size = 0x8000, scoped, tag = 'input window, operand 9, single buffered']
    #allocation10 [shape = 'u8[32768]{0}', space=vmem, size = 0x8000, scoped, tag = 'input window, operand 11, single buffered']
    #allocation11 [shape = 's32[1]{0}', space=sflag, size = 0x4, scoped, tag = 'scoped memory for ann_hist_forward.1']
    %18 = vsyncpa [#allocation3], 0
    %19 = vsyncpa [#allocation5], 0
    %20 = vsyncpa [#allocation8], 0
    %21 = vsyncpa [#allocation11], 0
    // Predicated region
    $region2: #{ann_hist_forward.1} parent=1 // pred_check
      _
    $region3: #{ann_hist_forward.1} parent=1 // pred_check_branch
      %23 = sbr.rel (0) target = $region5
    $region4: #{ann_hist_forward.1} parent=1 // pred_region
      _
    $region5: #{ann_hist_forward.1} parent=1 // pred_fallthru
      _
    // Predicated region
    $region6: #{ann_hist_forward.1} parent=1 // pred_check
      _
    $region7: #{ann_hist_forward.1} parent=1 // pred_check_branch
      %25 = sbr.rel (0) target = $region9
    $region8: #{ann_hist_forward.1} parent=1 // pred_region
      %s27 = ssub.s32 8192, 8192
      %28 = vsyncadd [#allocation3], %s27
      %s29 = sshll.u32 [#allocation2], 4
      %s30 = int_to_ptr.vmem [resolvable:$true] %s29
      %35 = dma.hbm_to_vmem [thread:$0]  %s1, 8192, %s30, [#allocation3], 256, 256, 16
    $region9: #{ann_hist_forward.1} parent=1 // pred_fallthru
      _
    // Predicated region
    $region10: #{ann_hist_forward.1} parent=1 // pred_check
      _
    $region11: #{ann_hist_forward.1} parent=1 // pred_check_branch
      %37 = sbr.rel (0) target = $region13
    $region12: #{ann_hist_forward.1} parent=1 // pred_region
      _
    $region13: #{ann_hist_forward.1} parent=1 // pred_fallthru
      _
    // Predicated region
    $region14: #{ann_hist_forward.1} parent=1 // pred_check
      _
    $region15: #{ann_hist_forward.1} parent=1 // pred_check_branch
      %39 = sbr.rel (0) target = $region17
    $region16: #{ann_hist_forward.1} parent=1 // pred_region
      %s41 = ssub.s32 16384, 16384
      %42 = vsyncadd [#allocation5], %s41
      %s43 = sshll.u32 [#allocation4], 4
      %s44 = int_to_ptr.vmem [resolvable:$true] %s43
      %49 = dma.hbm_to_vmem [thread:$0]  %s3, 16384, %s44, [#allocation5], 256, 256, 16
    $region17: #{ann_hist_forward.1} parent=1 // pred_fallthru
      _
    // Predicated region
    $region18: #{ann_hist_forward.1} parent=1 // pred_check
      _
    $region19: #{ann_hist_forward.1} parent=1 // pred_check_branch
      %51 = sbr.rel (0) target = $region21
    $region20: #{ann_hist_forward.1} parent=1 // pred_region
      _
    $region21: #{ann_hist_forward.1} parent=1 // pred_fallthru
      _
    // Predicated region
    $region22: #{ann_hist_forward.1} parent=1 // pred_check
      _
    $region23: #{ann_hist_forward.1} parent=1 // pred_check_branch
      %53 = sbr.rel (0) target = $region25
    $region24: #{ann_hist_forward.1} parent=1 // pred_region
      %s55 = ssub.s32 8192, 8192
      %56 = vsyncadd [#allocation5], %s55
      %s57 = sshll.u32 [#allocation6], 4
      %s58 = int_to_ptr.vmem [resolvable:$true] %s57
      %63 = dma.hbm_to_vmem [thread:$0]  %s5, 8192, %s58, [#allocation5], 128, 128, 8
    $region25: #{ann_hist_forward.1} parent=1 // pred_fallthru
      _
    // Predicated region
    $region26: #{ann_hist_forward.1} parent=1 // pred_check
      _
    $region27: #{ann_hist_forward.1} parent=1 // pred_check_branch
      %65 = sbr.rel (0) target = $region29
    $region28: #{ann_hist_forward.1} parent=1 // pred_region
      _
    $region29: #{ann_hist_forward.1} parent=1 // pred_fallthru
      _
    // Predicated region
    $region30: #{ann_hist_forward.1} parent=1 // pred_check
      _
    $region31: #{ann_hist_forward.1} parent=1 // pred_check_branch
      %67 = sbr.rel (0) target = $region33
    $region32: #{ann_hist_forward.1} parent=1 // pred_region
      %s69 = ssub.s32 2048, 2048
      %70 = vsyncadd [#allocation8], %s69
      %s71 = sshll.u32 [#allocation7], 4
      %s72 = int_to_ptr.vmem [resolvable:$true] %s71
      %77 = dma.hbm_to_vmem [thread:$0]  %s7, 2048, %s72, [#allocation8], 64, 64, 4
    $region33: #{ann_hist_forward.1} parent=1 // pred_fallthru
      _
    // Predicated region
    $region34: #{ann_hist_forward.1} parent=1 // pred_check
      _
    $region35: #{ann_hist_forward.1} parent=1 // pred_check_branch
      %79 = sbr.rel (0) target = $region37
    $region36: #{ann_hist_forward.1} parent=1 // pred_region
      _
    $region37: #{ann_hist_forward.1} parent=1 // pred_fallthru
      _
    // Predicated region
    $region38: #{ann_hist_forward.1} parent=1 // pred_check
      _
    $region39: #{ann_hist_forward.1} parent=1 // pred_check_branch
      %81 = sbr.rel (0) target = $region41
    $region40: #{ann_hist_forward.1} parent=1 // pred_region
      %s83 = ssub.s32 1024, 1024
      %84 = vsyncadd [#allocation8], %s83
      %s85 = sshll.u32 [#allocation9], 4
      %s86 = int_to_ptr.vmem [resolvable:$true] %s85
      %91 = dma.hbm_to_vmem [thread:$0]  %s9, 1024, %s86, [#allocation8], 64, 64, 4
    $region41: #{ann_hist_forward.1} parent=1 // pred_fallthru
      _
    // Predicated region
    $region42: #{ann_hist_forward.1} parent=1 // pred_check
      _
    $region43: #{ann_hist_forward.1} parent=1 // pred_check_branch
      %93 = sbr.rel (0) target = $region45
    $region44: #{ann_hist_forward.1} parent=1 // pred_region
      _
    $region45: #{ann_hist_forward.1} parent=1 // pred_fallthru
      _
    // Predicated region
    $region46: #{ann_hist_forward.1} parent=1 // pred_check
      _
    $region47: #{ann_hist_forward.1} parent=1 // pred_check_branch
      %95 = sbr.rel (0) target = $region49
    $region48: #{ann_hist_forward.1} parent=1 // pred_region
      %s97 = ssub.s32 1024, 1024
      %98 = vsyncadd [#allocation11], %s97
      %s99 = sshll.u32 [#allocation10], 4
      %s100 = int_to_ptr.vmem [resolvable:$true] %s99
      %105 = dma.hbm_to_vmem [thread:$0]  %s11, 1024, %s100, [#allocation11], 64, 64, 4
    $region49: #{ann_hist_forward.1} parent=1 // pred_fallthru
      _
    // Predicated region
    $region50: #{ann_hist_forward.1} parent=1 // pred_check
      _
    $region51: #{ann_hist_forward.1} parent=1 // pred_check_branch
      %107 = sbr.rel (0) target = $region53
    $region52: #{ann_hist_forward.1} parent=1 // pred_region
      _
    $region53: #{ann_hist_forward.1} parent=1 // pred_fallthru
      _
    // Predicated region
    $region54: #{ann_hist_forward.1} parent=1 // pred_check
      _
    $region55: #{ann_hist_forward.1} parent=1 // pred_check_branch
      %109 = sbr.rel (0) target = $region57
    $region56: #{ann_hist_forward.1} parent=1 // pred_region
      %110 = dma.done [#allocation3], 8192
    $region57: #{ann_hist_forward.1} parent=1 // pred_fallthru
      _
    // Predicated region
    $region58: #{ann_hist_forward.1} parent=1 // pred_check
      _
    $region59: #{ann_hist_forward.1} parent=1 // pred_check_branch
      %112 = sbr.rel (0) target = $region61
    $region60: #{ann_hist_forward.1} parent=1 // pred_region
      %113 = dma.done [#allocation5], 16384
    $region61: #{ann_hist_forward.1} parent=1 // pred_fallthru
      _
    // Predicated region
    $region62: #{ann_hist_forward.1} parent=1 // pred_check
      _
    $region63: #{ann_hist_forward.1} parent=1 // pred_check_branch
      %115 = sbr.rel (0) target = $region65
    $region64: #{ann_hist_forward.1} parent=1 // pred_region
      %116 = dma.done [#allocation5], 8192
    $region65: #{ann_hist_forward.1} parent=1 // pred_fallthru
      _
    // Predicated region
    $region66: #{ann_hist_forward.1} parent=1 // pred_check
      _
    $region67: #{ann_hist_forward.1} parent=1 // pred_check_branch
      %118 = sbr.rel (0) target = $region69
    $region68: #{ann_hist_forward.1} parent=1 // pred_region
      %119 = dma.done [#allocation8], 2048
    $region69: #{ann_hist_forward.1} parent=1 // pred_fallthru
      _
    // Predicated region
    $region70: #{ann_hist_forward.1} parent=1 // pred_check
      _
    $region71: #{ann_hist_forward.1} parent=1 // pred_check_branch
      %121 = sbr.rel (0) target = $region73
    $region72: #{ann_hist_forward.1} parent=1 // pred_region
      %122 = dma.done [#allocation8], 1024
    $region73: #{ann_hist_forward.1} parent=1 // pred_fallthru
      _
    // Predicated region
    $region74: #{ann_hist_forward.1} parent=1 // pred_check
      _
    $region75: #{ann_hist_forward.1} parent=1 // pred_check_branch
      %124 = sbr.rel (0) target = $region77
    $region76: #{ann_hist_forward.1} parent=1 // pred_region
      %125 = dma.done [#allocation11], 1024
    $region77: #{ann_hist_forward.1} parent=1 // pred_fallthru
      _
    %v127 = vld [vmem:[%s0] sm:$0xff]
    %v128 = vld [vmem:[#allocation2] sm:$0xff]
    %v129 = vld [vmem:[#allocation2 + $0x8] sm:$0xff]
    %v130 = vld [vmem:[#allocation2 + $0x10] sm:$0xff]
    %v131 = vld [vmem:[#allocation2 + $0x18] sm:$0xff]
    %v132 = vld [vmem:[#allocation2 + $0x20] sm:$0xff]
    %v133 = vld [vmem:[#allocation2 + $0x28] sm:$0xff]
    %v134 = vld [vmem:[#allocation2 + $0x30] sm:$0xff]
    %v135 = vld [vmem:[#allocation2 + $0x38] sm:$0xff]
    %v136 = vld [vmem:[#allocation2 + $0x40] sm:$0xff]
    %v137 = vld [vmem:[#allocation2 + $0x48] sm:$0xff]
    %v138 = vld [vmem:[#allocation2 + $0x50] sm:$0xff]
    %v139 = vld [vmem:[#allocation2 + $0x58] sm:$0xff]
    %v140 = vld [vmem:[#allocation2 + $0x60] sm:$0xff]
    %v141 = vld [vmem:[#allocation2 + $0x68] sm:$0xff]
    %v142 = vld [vmem:[#allocation2 + $0x70] sm:$0xff]
    %v143 = vld [vmem:[#allocation2 + $0x78] sm:$0xff]
    %v144 = vld [vmem:[#allocation2 + $0x80] sm:$0xff]
    %v145 = vld [vmem:[#allocation2 + $0x88] sm:$0xff]
    %v146 = vld [vmem:[#allocation2 + $0x90] sm:$0xff]
    %v147 = vld [vmem:[#allocation2 + $0x98] sm:$0xff]
    %v148 = vld [vmem:[#allocation2 + $0xa0] sm:$0xff]
    %v149 = vld [vmem:[#allocation2 + $0xa8] sm:$0xff]
    %v150 = vld [vmem:[#allocation2 + $0xb0] sm:$0xff]
    %v151 = vld [vmem:[#allocation2 + $0xb8] sm:$0xff]
    %v152 = vld [vmem:[#allocation2 + $0xc0] sm:$0xff]
    %v153 = vld [vmem:[#allocation2 + $0xc8] sm:$0xff]
    %v154 = vld [vmem:[#allocation2 + $0xd0] sm:$0xff]
    %v155 = vld [vmem:[#allocation2 + $0xd8] sm:$0xff]
    %v156 = vld [vmem:[#allocation2 + $0xe0] sm:$0xff]
    %v157 = vld [vmem:[#allocation2 + $0xe8] sm:$0xff]
    %v158 = vld [vmem:[#allocation2 + $0xf0] sm:$0xff]
    %v159 = vld [vmem:[#allocation2 + $0xf8] sm:$0xff]
    %v160 = vld [vmem:[#allocation2 + $0x100] sm:$0xff]
    %v161 = vld [vmem:[#allocation2 + $0x108] sm:$0xff]
    %v162 = vld [vmem:[#allocation2 + $0x110] sm:$0xff]
    %v163 = vld [vmem:[#allocation2 + $0x118] sm:$0xff]
    %v164 = vld [vmem:[#allocation2 + $0x120] sm:$0xff]
    %v165 = vld [vmem:[#allocation2 + $0x128] sm:$0xff]
    %v166 = vld [vmem:[#allocation2 + $0x130] sm:$0xff]
    %v167 = vld [vmem:[#allocation2 + $0x138] sm:$0xff]
    %v168 = vld [vmem:[#allocation2 + $0x140] sm:$0xff]
    %v169 = vld [vmem:[#allocation2 + $0x148] sm:$0xff]
    %v170 = vld [vmem:[#allocation2 + $0x150] sm:$0xff]
    %v171 = vld [vmem:[#allocation2 + $0x158] sm:$0xff]
    %v172 = vld [vmem:[#allocation2 + $0x160] sm:$0xff]
    %v173 = vld [vmem:[#allocation2 + $0x168] sm:$0xff]
    %v174 = vld [vmem:[#allocation2 + $0x170] sm:$0xff]
    %v175 = vld [vmem:[#allocation2 + $0x178] sm:$0xff]
    %v176 = vld [vmem:[#allocation2 + $0x180] sm:$0xff]
    %v177 = vld [vmem:[#allocation2 + $0x188] sm:$0xff]
    %v178 = vld [vmem:[#allocation2 + $0x190] sm:$0xff]
    %v179 = vld [vmem:[#allocation2 + $0x198] sm:$0xff]
    %v180 = vld [vmem:[#allocation2 + $0x1a0] sm:$0xff]
    %v181 = vld [vmem:[#allocation2 + $0x1a8] sm:$0xff]
    %v182 = vld [vmem:[#allocation2 + $0x1b0] sm:$0xff]
    %v183 = vld [vmem:[#allocation2 + $0x1b8] sm:$0xff]
    %v184 = vld [vmem:[#allocation2 + $0x1c0] sm:$0xff]
    %v185 = vld [vmem:[#allocation2 + $0x1c8] sm:$0xff]
    %v186 = vld [vmem:[#allocation2 + $0x1d0] sm:$0xff]
    %v187 = vld [vmem:[#allocation2 + $0x1d8] sm:$0xff]
    %v188 = vld [vmem:[#allocation2 + $0x1e0] sm:$0xff]
    %v189 = vld [vmem:[#allocation2 + $0x1e8] sm:$0xff]
    %v190 = vld [vmem:[#allocation2 + $0x1f0] sm:$0xff]
    %v191 = vld [vmem:[#allocation2 + $0x1f8] sm:$0xff]
    %v192 = vld [vmem:[%s2] sm:$0xf]
    %v194 = vlaneseq
    %v195 = vshrl.u32 %v194, 7
    %v196 = vsub.s32 0, %v195
    %v197 = vrot.slane %v192, %v196
    %v198 = vlaneseq
    %v199 = vshrl.u32 %v198, 7
    %v200 = vsub.s32 1, %v199
    %v201 = vrot.slane %v192, %v200
    %v202 = vlaneseq
    %v203 = vshrl.u32 %v202, 7
    %v204 = vsub.s32 2, %v203
    %v205 = vrot.slane %v192, %v204
    %v206 = vlaneseq
    %v207 = vshrl.u32 %v206, 7
    %v208 = vsub.s32 3, %v207
    %v209 = vrot.slane %v192, %v208
    %v215 = vunpack.c.l.b16 %v127
    %v216 = vunpack.c.h.b16 %v127
    %v217 = vpack.c.b16 %v215, %v215
    %v218 = vpack.c.b16 %v216, %v216
    %v285 = vunpack.c.l.b16 %v128
    %v286 = vunpack.c.h.b16 %v128
    %v287 = vunpack.c.l.b16 %v129
    %v288 = vunpack.c.h.b16 %v129
    %v289 = vunpack.c.l.b16 %v130
    %v290 = vunpack.c.h.b16 %v130
    %v291 = vunpack.c.l.b16 %v131
    %v292 = vunpack.c.h.b16 %v131
    %v293 = vunpack.c.l.b16 %v132
    %v294 = vunpack.c.h.b16 %v132
    %v295 = vunpack.c.l.b16 %v133
    %v296 = vunpack.c.h.b16 %v133
    %v297 = vunpack.c.l.b16 %v134
    %v298 = vunpack.c.h.b16 %v134
    %v299 = vunpack.c.l.b16 %v135
    %v300 = vunpack.c.h.b16 %v135
    %v301 = vunpack.c.l.b16 %v136
    %v302 = vunpack.c.h.b16 %v136
    %v303 = vunpack.c.l.b16 %v137
    %v304 = vunpack.c.h.b16 %v137
    %v305 = vunpack.c.l.b16 %v138
    %v306 = vunpack.c.h.b16 %v138
    %v307 = vunpack.c.l.b16 %v139
    %v308 = vunpack.c.h.b16 %v139
    %v309 = vunpack.c.l.b16 %v140
    %v310 = vunpack.c.h.b16 %v140
    %v311 = vunpack.c.l.b16 %v141
    %v312 = vunpack.c.h.b16 %v141
    %v313 = vunpack.c.l.b16 %v142
    %v314 = vunpack.c.h.b16 %v142
    %v315 = vunpack.c.l.b16 %v143
    %v316 = vunpack.c.h.b16 %v143
    %v317 = vunpack.c.l.b16 %v144
    %v318 = vunpack.c.h.b16 %v144
    %v319 = vunpack.c.l.b16 %v145
    %v320 = vunpack.c.h.b16 %v145
    %v321 = vunpack.c.l.b16 %v146
    %v322 = vunpack.c.h.b16 %v146
    %v323 = vunpack.c.l.b16 %v147
    %v324 = vunpack.c.h.b16 %v147
    %v325 = vunpack.c.l.b16 %v148
    %v326 = vunpack.c.h.b16 %v148
    %v327 = vunpack.c.l.b16 %v149
    %v328 = vunpack.c.h.b16 %v149
    %v329 = vunpack.c.l.b16 %v150
    %v330 = vunpack.c.h.b16 %v150
    %v331 = vunpack.c.l.b16 %v151
    %v332 = vunpack.c.h.b16 %v151
    %v333 = vunpack.c.l.b16 %v152
    %v334 = vunpack.c.h.b16 %v152
    %v335 = vunpack.c.l.b16 %v153
    %v336 = vunpack.c.h.b16 %v153
    %v337 = vunpack.c.l.b16 %v154
    %v338 = vunpack.c.h.b16 %v154
    %v339 = vunpack.c.l.b16 %v155
    %v340 = vunpack.c.h.b16 %v155
    %v341 = vunpack.c.l.b16 %v156
    %v342 = vunpack.c.h.b16 %v156
    %v343 = vunpack.c.l.b16 %v157
    %v344 = vunpack.c.h.b16 %v157
    %v345 = vunpack.c.l.b16 %v158
    %v346 = vunpack.c.h.b16 %v158
    %v347 = vunpack.c.l.b16 %v159
    %v348 = vunpack.c.h.b16 %v159
    %v349 = vunpack.c.l.b16 %v160
    %v350 = vunpack.c.h.b16 %v160
    %v351 = vunpack.c.l.b16 %v161
    %v352 = vunpack.c.h.b16 %v161
    %v353 = vunpack.c.l.b16 %v162
    %v354 = vunpack.c.h.b16 %v162
    %v355 = vunpack.c.l.b16 %v163
    %v356 = vunpack.c.h.b16 %v163
    %v357 = vunpack.c.l.b16 %v164
    %v358 = vunpack.c.h.b16 %v164
    %v359 = vunpack.c.l.b16 %v165
    %v360 = vunpack.c.h.b16 %v165
    %v361 = vunpack.c.l.b16 %v166
    %v362 = vunpack.c.h.b16 %v166
    %v363 = vunpack.c.l.b16 %v167
    %v364 = vunpack.c.h.b16 %v167
    %v365 = vunpack.c.l.b16 %v168
    %v366 = vunpack.c.h.b16 %v168
    %v367 = vunpack.c.l.b16 %v169
    %v368 = vunpack.c.h.b16 %v169
    %v369 = vunpack.c.l.b16 %v170
    %v370 = vunpack.c.h.b16 %v170
    %v371 = vunpack.c.l.b16 %v171
    %v372 = vunpack.c.h.b16 %v171
    %v373 = vunpack.c.l.b16 %v172
    %v374 = vunpack.c.h.b16 %v172
    %v375 = vunpack.c.l.b16 %v173
    %v376 = vunpack.c.h.b16 %v173
    %v377 = vunpack.c.l.b16 %v174
    %v378 = vunpack.c.h.b16 %v174
    %v379 = vunpack.c.l.b16 %v175
    %v380 = vunpack.c.h.b16 %v175
    %v381 = vunpack.c.l.b16 %v176
    %v382 = vunpack.c.h.b16 %v176
    %v383 = vunpack.c.l.b16 %v177
    %v384 = vunpack.c.h.b16 %v177
    %v385 = vunpack.c.l.b16 %v178
    %v386 = vunpack.c.h.b16 %v178
    %v387 = vunpack.c.l.b16 %v179
    %v388 = vunpack.c.h.b16 %v179
    %v389 = vunpack.c.l.b16 %v180
    %v390 = vunpack.c.h.b16 %v180
    %v391 = vunpack.c.l.b16 %v181
    %v392 = vunpack.c.h.b16 %v181
    %v393 = vunpack.c.l.b16 %v182
    %v394 = vunpack.c.h.b16 %v182
    %v395 = vunpack.c.l.b16 %v183
    %v396 = vunpack.c.h.b16 %v183
    %v397 = vunpack.c.l.b16 %v184
    %v398 = vunpack.c.h.b16 %v184
    %v399 = vunpack.c.l.b16 %v185
    %v400 = vunpack.c.h.b16 %v185
    %v401 = vunpack.c.l.b16 %v186
    %v402 = vunpack.c.h.b16 %v186
    %v403 = vunpack.c.l.b16 %v187
    %v404 = vunpack.c.h.b16 %v187
    %v405 = vunpack.c.l.b16 %v188
    %v406 = vunpack.c.h.b16 %v188
    %v407 = vunpack.c.l.b16 %v189
    %v408 = vunpack.c.h.b16 %v189
    %v409 = vunpack.c.l.b16 %v190
    %v410 = vunpack.c.h.b16 %v190
    %v411 = vunpack.c.l.b16 %v191
    %v412 = vunpack.c.h.b16 %v191
    %v413 = vpack.c.b16 %v289, %v285
    %v414 = vpack.c.b16 %v290, %v286
    %v415 = vpack.c.b16 %v291, %v287
    %v416 = vpack.c.b16 %v292, %v288
    %v417 = vpack.c.b16 %v297, %v293
    %v418 = vpack.c.b16 %v298, %v294
    %v419 = vpack.c.b16 %v299, %v295
    %v420 = vpack.c.b16 %v300, %v296
    %v421 = vpack.c.b16 %v305, %v301
    %v422 = vpack.c.b16 %v306, %v302
    %v423 = vpack.c.b16 %v307, %v303
    %v424 = vpack.c.b16 %v308, %v304
    %v425 = vpack.c.b16 %v313, %v309
    %v426 = vpack.c.b16 %v314, %v310
    %v427 = vpack.c.b16 %v315, %v311
    %v428 = vpack.c.b16 %v316, %v312
    %v429 = vpack.c.b16 %v321, %v317
    %v430 = vpack.c.b16 %v322, %v318
    %v431 = vpack.c.b16 %v323, %v319
    %v432 = vpack.c.b16 %v324, %v320
    %v433 = vpack.c.b16 %v329, %v325
    %v434 = vpack.c.b16 %v330, %v326
    %v435 = vpack.c.b16 %v331, %v327
    %v436 = vpack.c.b16 %v332, %v328
    %v437 = vpack.c.b16 %v337, %v333
    %v438 = vpack.c.b16 %v338, %v334
    %v439 = vpack.c.b16 %v339, %v335
    %v440 = vpack.c.b16 %v340, %v336
    %v441 = vpack.c.b16 %v345, %v341
    %v442 = vpack.c.b16 %v346, %v342
    %v443 = vpack.c.b16 %v347, %v343
    %v444 = vpack.c.b16 %v348, %v344
    %v445 = vpack.c.b16 %v353, %v349
    %v446 = vpack.c.b16 %v354, %v350
    %v447 = vpack.c.b16 %v355, %v351
    %v448 = vpack.c.b16 %v356, %v352
    %v449 = vpack.c.b16 %v361, %v357
    %v450 = vpack.c.b16 %v362, %v358
    %v451 = vpack.c.b16 %v363, %v359
    %v452 = vpack.c.b16 %v364, %v360
    %v453 = vpack.c.b16 %v369, %v365
    %v454 = vpack.c.b16 %v370, %v366
    %v455 = vpack.c.b16 %v371, %v367
    %v456 = vpack.c.b16 %v372, %v368
    %v457 = vpack.c.b16 %v377, %v373
    %v458 = vpack.c.b16 %v378, %v374
    %v459 = vpack.c.b16 %v379, %v375
    %v460 = vpack.c.b16 %v380, %v376
    %v461 = vpack.c.b16 %v385, %v381
    %v462 = vpack.c.b16 %v386, %v382
    %v463 = vpack.c.b16 %v387, %v383
    %v464 = vpack.c.b16 %v388, %v384
    %v465 = vpack.c.b16 %v393, %v389
    %v466 = vpack.c.b16 %v394, %v390
    %v467 = vpack.c.b16 %v395, %v391
    %v468 = vpack.c.b16 %v396, %v392
    %v469 = vpack.c.b16 %v401, %v397
    %v470 = vpack.c.b16 %v402, %v398
    %v471 = vpack.c.b16 %v403, %v399
    %v472 = vpack.c.b16 %v404, %v400
    %v473 = vpack.c.b16 %v409, %v405
    %v474 = vpack.c.b16 %v410, %v406
    %v475 = vpack.c.b16 %v411, %v407
    %v476 = vpack.c.b16 %v412, %v408
    %541 = vmatprep.subr.bf16.mxu0 %v442
    %542 = vmatpush1.bf16.msra.mxu0 %v441
    %543 = vmatprep.subr.bf16.mxu0 %v438
    %544 = vmatpush1.bf16.msra.mxu0 %v437
    %545 = vmatprep.subr.bf16.mxu0 %v434
    %546 = vmatpush1.bf16.msra.mxu0 %v433
    %547 = vmatprep.subr.bf16.mxu0 %v430
    %548 = vmatpush1.bf16.msra.mxu0 %v429
    %549 = vmatprep.subr.bf16.mxu0 %v426
    %550 = vmatpush1.bf16.msra.mxu0 %v425
    %551 = vmatprep.subr.bf16.mxu0 %v422
    %552 = vmatpush1.bf16.msra.mxu0 %v421
    %553 = vmatprep.subr.bf16.mxu0 %v418
    %554 = vmatpush1.bf16.msra.mxu0 %v417
    %555 = vmatprep.subr.bf16.mxu0 %v414
    %556 = vmatpush1.bf16.msra.mxu0 %v413
    %557 = vmatprep.subr.bf16.mxu0 %v474
    %558 = vmatpush2.bf16.msra.mxu0 %v473
    %559 = vmatprep.subr.bf16.mxu0 %v470
    %560 = vmatpush2.bf16.msra.mxu0 %v469
    %561 = vmatprep.subr.bf16.mxu0 %v466
    %562 = vmatpush2.bf16.msra.mxu0 %v465
    %563 = vmatprep.subr.bf16.mxu0 %v462
    %564 = vmatpush2.bf16.msra.mxu0 %v461
    %565 = vmatprep.subr.bf16.mxu0 %v458
    %566 = vmatpush2.bf16.msra.mxu0 %v457
    %567 = vmatprep.subr.bf16.mxu0 %v454
    %568 = vmatpush2.bf16.msra.mxu0 %v453
    %569 = vmatprep.subr.bf16.mxu0 %v450
    %570 = vmatpush2.bf16.msra.mxu0 %v449
    %571 = vmatprep.subr.bf16.mxu0 %v446
    %572 = vmatpush2.bf16.msra.mxu0 %v445
    %573 = vmatprep.mubr.bf16.mxu0 %v218
    %574 = vmatmul.mubr.bf16.gmra.mxu0 %v217
    %v575 = vpop.f32.mrf.mxu0
    %v576 = vadd.f32 %v197, %v575
    %v577 = vpop.f32.mrf.mxu0
    %v578 = vadd.f32 %v201, %v577
    %v579 = vpop.f32.mrf.mxu0
    %v580 = vpop.f32.mrf.mxu0
    %581 = vdwg.mxu0
    %582 = vmatprep.subr.bf16.mxu0 %v444
    %583 = vmatpush1.bf16.msra.mxu0 %v443
    %584 = vmatprep.subr.bf16.mxu0 %v440
    %585 = vmatpush1.bf16.msra.mxu0 %v439
    %586 = vmatprep.subr.bf16.mxu0 %v436
    %587 = vmatpush1.bf16.msra.mxu0 %v435
    %588 = vmatprep.subr.bf16.mxu0 %v432
    %589 = vmatpush1.bf16.msra.mxu0 %v431
    %590 = vmatprep.subr.bf16.mxu0 %v428
    %591 = vmatpush1.bf16.msra.mxu0 %v427
    %592 = vmatprep.subr.bf16.mxu0 %v424
    %593 = vmatpush1.bf16.msra.mxu0 %v423
    %594 = vmatprep.subr.bf16.mxu0 %v420
    %595 = vmatpush1.bf16.msra.mxu0 %v419
    %596 = vmatprep.subr.bf16.mxu0 %v416
    %597 = vmatpush1.bf16.msra.mxu0 %v415
    %598 = vmatprep.subr.bf16.mxu0 %v476
    %599 = vmatpush2.bf16.msra.mxu0 %v475
    %600 = vmatprep.subr.bf16.mxu0 %v472
    %601 = vmatpush2.bf16.msra.mxu0 %v471
    %602 = vmatprep.subr.bf16.mxu0 %v468
    %603 = vmatpush2.bf16.msra.mxu0 %v467
    %604 = vmatprep.subr.bf16.mxu0 %v464
    %605 = vmatpush2.bf16.msra.mxu0 %v463
    %606 = vmatprep.subr.bf16.mxu0 %v460
    %607 = vmatpush2.bf16.msra.mxu0 %v459
    %608 = vmatprep.subr.bf16.mxu0 %v456
    %609 = vmatpush2.bf16.msra.mxu0 %v455
    %610 = vmatprep.subr.bf16.mxu0 %v452
    %611 = vmatpush2.bf16.msra.mxu0 %v451
    %612 = vmatprep.subr.bf16.mxu0 %v448
    %613 = vmatpush2.bf16.msra.mxu0 %v447
    %614 = vmatprep.mubr.bf16.mxu0 %v218
    %615 = vmatmul.mubr.bf16.gmra.mxu0 %v217
    %v616 = vpop.f32.mrf.mxu0
    %v617 = vadd.f32 %v205, %v616
    %v618 = vpop.f32.mrf.mxu0
    %v619 = vadd.f32 %v209, %v618
    %v620 = vpop.f32.mrf.mxu0
    %v621 = vpop.f32.mrf.mxu0
    %622 = vdwg.mxu0
    %v623 = vmax.f32 %v576, 0.0
    %v624 = vmax.f32 %v578, 0.0
    %v625 = vmax.f32 %v617, 0.0
    %v626 = vmax.f32 %v619, 0.0
    %v627 = vpack.c.bf16 %v623, %v623
    %v628 = vpack.c.bf16 %v624, %v624
    %v629 = vpack.c.bf16 %v625, %v625
    %v630 = vpack.c.bf16 %v626, %v626
    %v631 = vld [vmem:[#allocation4] sm:$0xff]
    %v632 = vld [vmem:[#allocation4 + $0x8] sm:$0xff]
    %v633 = vld [vmem:[#allocation4 + $0x10] sm:$0xff]
    %v634 = vld [vmem:[#allocation4 + $0x18] sm:$0xff]
    %v635 = vld [vmem:[#allocation4 + $0x20] sm:$0xff]
    %v636 = vld [vmem:[#allocation4 + $0x28] sm:$0xff]
    %v637 = vld [vmem:[#allocation4 + $0x30] sm:$0xff]
    %v638 = vld [vmem:[#allocation4 + $0x38] sm:$0xff]
    %v639 = vld [vmem:[#allocation4 + $0x40] sm:$0xff]
    %v640 = vld [vmem:[#allocation4 + $0x48] sm:$0xff]
    %v641 = vld [vmem:[#allocation4 + $0x50] sm:$0xff]
    %v642 = vld [vmem:[#allocation4 + $0x58] sm:$0xff]
    %v643 = vld [vmem:[#allocation4 + $0x60] sm:$0xff]
    %v644 = vld [vmem:[#allocation4 + $0x68] sm:$0xff]
    %v645 = vld [vmem:[#allocation4 + $0x70] sm:$0xff]
    %v646 = vld [vmem:[#allocation4 + $0x78] sm:$0xff]
    %v647 = vld [vmem:[#allocation4 + $0x80] sm:$0xff]
    %v648 = vld [vmem:[#allocation4 + $0x88] sm:$0xff]
    %v649 = vld [vmem:[#allocation4 + $0x90] sm:$0xff]
    %v650 = vld [vmem:[#allocation4 + $0x98] sm:$0xff]
    %v651 = vld [vmem:[#allocation4 + $0xa0] sm:$0xff]
    %v652 = vld [vmem:[#allocation4 + $0xa8] sm:$0xff]
    %v653 = vld [vmem:[#allocation4 + $0xb0] sm:$0xff]
    %v654 = vld [vmem:[#allocation4 + $0xb8] sm:$0xff]
    %v655 = vld [vmem:[#allocation4 + $0xc0] sm:$0xff]
    %v656 = vld [vmem:[#allocation4 + $0xc8] sm:$0xff]
    %v657 = vld [vmem:[#allocation4 + $0xd0] sm:$0xff]
    %v658 = vld [vmem:[#allocation4 + $0xd8] sm:$0xff]
    %v659 = vld [vmem:[#allocation4 + $0xe0] sm:$0xff]
    %v660 = vld [vmem:[#allocation4 + $0xe8] sm:$0xff]
    %v661 = vld [vmem:[#allocation4 + $0xf0] sm:$0xff]
    %v662 = vld [vmem:[#allocation4 + $0xf8] sm:$0xff]
    %v663 = vld [vmem:[#allocation4 + $0x100] sm:$0xff]
    %v664 = vld [vmem:[#allocation4 + $0x108] sm:$0xff]
    %v665 = vld [vmem:[#allocation4 + $0x110] sm:$0xff]
    %v666 = vld [vmem:[#allocation4 + $0x118] sm:$0xff]
    %v667 = vld [vmem:[#allocation4 + $0x120] sm:$0xff]
    %v668 = vld [vmem:[#allocation4 + $0x128] sm:$0xff]
    %v669 = vld [vmem:[#allocation4 + $0x130] sm:$0xff]
    %v670 = vld [vmem:[#allocation4 + $0x138] sm:$0xff]
    %v671 = vld [vmem:[#allocation4 + $0x140] sm:$0xff]
    %v672 = vld [vmem:[#allocation4 + $0x148] sm:$0xff]
    %v673 = vld [vmem:[#allocation4 + $0x150] sm:$0xff]
    %v674 = vld [vmem:[#allocation4 + $0x158] sm:$0xff]
    %v675 = vld [vmem:[#allocation4 + $0x160] sm:$0xff]
    %v676 = vld [vmem:[#allocation4 + $0x168] sm:$0xff]
    %v677 = vld [vmem:[#allocation4 + $0x170] sm:$0xff]
    %v678 = vld [vmem:[#allocation4 + $0x178] sm:$0xff]
    %v679 = vld [vmem:[#allocation4 + $0x180] sm:$0xff]
    %v680 = vld [vmem:[#allocation4 + $0x188] sm:$0xff]
    %v681 = vld [vmem:[#allocation4 + $0x190] sm:$0xff]
    %v682 = vld [vmem:[#allocation4 + $0x198] sm:$0xff]
    %v683 = vld [vmem:[#allocation4 + $0x1a0] sm:$0xff]
    %v684 = vld [vmem:[#allocation4 + $0x1a8] sm:$0xff]
    %v685 = vld [vmem:[#allocation4 + $0x1b0] sm:$0xff]
    %v686 = vld [vmem:[#allocation4 + $0x1b8] sm:$0xff]
    %v687 = vld [vmem:[#allocation4 + $0x1c0] sm:$0xff]
    %v688 = vld [vmem:[#allocation4 + $0x1c8] sm:$0xff]
    %v689 = vld [vmem:[#allocation4 + $0x1d0] sm:$0xff]
    %v690 = vld [vmem:[#allocation4 + $0x1d8] sm:$0xff]
    %v691 = vld [vmem:[#allocation4 + $0x1e0] sm:$0xff]
    %v692 = vld [vmem:[#allocation4 + $0x1e8] sm:$0xff]
    %v693 = vld [vmem:[#allocation4 + $0x1f0] sm:$0xff]
    %v694 = vld [vmem:[#allocation4 + $0x1f8] sm:$0xff]
    %v695 = vld [vmem:[#allocation4 + $0x200] sm:$0xff]
    %v696 = vld [vmem:[#allocation4 + $0x208] sm:$0xff]
    %v697 = vld [vmem:[#allocation4 + $0x210] sm:$0xff]
    %v698 = vld [vmem:[#allocation4 + $0x218] sm:$0xff]
    %v699 = vld [vmem:[#allocation4 + $0x220] sm:$0xff]
    %v700 = vld [vmem:[#allocation4 + $0x228] sm:$0xff]
    %v701 = vld [vmem:[#allocation4 + $0x230] sm:$0xff]
    %v702 = vld [vmem:[#allocation4 + $0x238] sm:$0xff]
    %v703 = vld [vmem:[#allocation4 + $0x240] sm:$0xff]
    %v704 = vld [vmem:[#allocation4 + $0x248] sm:$0xff]
    %v705 = vld [vmem:[#allocation4 + $0x250] sm:$0xff]
    %v706 = vld [vmem:[#allocation4 + $0x258] sm:$0xff]
    %v707 = vld [vmem:[#allocation4 + $0x260] sm:$0xff]
    %v708 = vld [vmem:[#allocation4 + $0x268] sm:$0xff]
    %v709 = vld [vmem:[#allocation4 + $0x270] sm:$0xff]
    %v710 = vld [vmem:[#allocation4 + $0x278] sm:$0xff]
    %v711 = vld [vmem:[#allocation4 + $0x280] sm:$0xff]
    %v712 = vld [vmem:[#allocation4 + $0x288] sm:$0xff]
    %v713 = vld [vmem:[#allocation4 + $0x290] sm:$0xff]
    %v714 = vld [vmem:[#allocation4 + $0x298] sm:$0xff]
    %v715 = vld [vmem:[#allocation4 + $0x2a0] sm:$0xff]
    %v716 = vld [vmem:[#allocation4 + $0x2a8] sm:$0xff]
    %v717 = vld [vmem:[#allocation4 + $0x2b0] sm:$0xff]
    %v718 = vld [vmem:[#allocation4 + $0x2b8] sm:$0xff]
    %v719 = vld [vmem:[#allocation4 + $0x2c0] sm:$0xff]
    %v720 = vld [vmem:[#allocation4 + $0x2c8] sm:$0xff]
    %v721 = vld [vmem:[#allocation4 + $0x2d0] sm:$0xff]
    %v722 = vld [vmem:[#allocation4 + $0x2d8] sm:$0xff]
    %v723 = vld [vmem:[#allocation4 + $0x2e0] sm:$0xff]
    %v724 = vld [vmem:[#allocation4 + $0x2e8] sm:$0xff]
    %v725 = vld [vmem:[#allocation4 + $0x2f0] sm:$0xff]
    %v726 = vld [vmem:[#allocation4 + $0x2f8] sm:$0xff]
    %v727 = vld [vmem:[#allocation4 + $0x300] sm:$0xff]
    %v728 = vld [vmem:[#allocation4 + $0x308] sm:$0xff]
    %v729 = vld [vmem:[#allocation4 + $0x310] sm:$0xff]
    %v730 = vld [vmem:[#allocation4 + $0x318] sm:$0xff]
    %v731 = vld [vmem:[#allocation4 + $0x320] sm:$0xff]
    %v732 = vld [vmem:[#allocation4 + $0x328] sm:$0xff]
    %v733 = vld [vmem:[#allocation4 + $0x330] sm:$0xff]
    %v734 = vld [vmem:[#allocation4 + $0x338] sm:$0xff]
    %v735 = vld [vmem:[#allocation4 + $0x340] sm:$0xff]
    %v736 = vld [vmem:[#allocation4 + $0x348] sm:$0xff]
    %v737 = vld [vmem:[#allocation4 + $0x350] sm:$0xff]
    %v738 = vld [vmem:[#allocation4 + $0x358] sm:$0xff]
    %v739 = vld [vmem:[#allocation4 + $0x360] sm:$0xff]
    %v740 = vld [vmem:[#allocation4 + $0x368] sm:$0xff]
    %v741 = vld [vmem:[#allocation4 + $0x370] sm:$0xff]
    %v742 = vld [vmem:[#allocation4 + $0x378] sm:$0xff]
    %v743 = vld [vmem:[#allocation4 + $0x380] sm:$0xff]
    %v744 = vld [vmem:[#allocation4 + $0x388] sm:$0xff]
    %v745 = vld [vmem:[#allocation4 + $0x390] sm:$0xff]
    %v746 = vld [vmem:[#allocation4 + $0x398] sm:$0xff]
    %v747 = vld [vmem:[#allocation4 + $0x3a0] sm:$0xff]
    %v748 = vld [vmem:[#allocation4 + $0x3a8] sm:$0xff]
    %v749 = vld [vmem:[#allocation4 + $0x3b0] sm:$0xff]
    %v750 = vld [vmem:[#allocation4 + $0x3b8] sm:$0xff]
    %v751 = vld [vmem:[#allocation4 + $0x3c0] sm:$0xff]
    %v752 = vld [vmem:[#allocation4 + $0x3c8] sm:$0xff]
    %v753 = vld [vmem:[#allocation4 + $0x3d0] sm:$0xff]
    %v754 = vld [vmem:[#allocation4 + $0x3d8] sm:$0xff]
    %v755 = vld [vmem:[#allocation4 + $0x3e0] sm:$0xff]
    %v756 = vld [vmem:[#allocation4 + $0x3e8] sm:$0xff]
    %v757 = vld [vmem:[#allocation4 + $0x3f0] sm:$0xff]
    %v758 = vld [vmem:[#allocation4 + $0x3f8] sm:$0xff]
    %v759 = vld [vmem:[%s4] sm:$0xf]
    %v761 = vlaneseq
    %v762 = vshrl.u32 %v761, 7
    %v763 = vsub.s32 0, %v762
    %v764 = vrot.slane %v759, %v763
    %v765 = vlaneseq
    %v766 = vshrl.u32 %v765, 7
    %v767 = vsub.s32 1, %v766
    %v768 = vrot.slane %v759, %v767
    %v769 = vlaneseq
    %v770 = vshrl.u32 %v769, 7
    %v771 = vsub.s32 2, %v770
    %v772 = vrot.slane %v759, %v771
    %v773 = vlaneseq
    %v774 = vshrl.u32 %v773, 7
    %v775 = vsub.s32 3, %v774
    %v776 = vrot.slane %v759, %v775
    %v909 = vunpack.c.l.b16 %v631
    %v910 = vunpack.c.h.b16 %v631
    %v911 = vunpack.c.l.b16 %v632
    %v912 = vunpack.c.h.b16 %v632
    %v913 = vunpack.c.l.b16 %v633
    %v914 = vunpack.c.h.b16 %v633
    %v915 = vunpack.c.l.b16 %v634
    %v916 = vunpack.c.h.b16 %v634
    %v917 = vunpack.c.l.b16 %v635
    %v918 = vunpack.c.h.b16 %v635
    %v919 = vunpack.c.l.b16 %v636
    %v920 = vunpack.c.h.b16 %v636
    %v921 = vunpack.c.l.b16 %v637
    %v922 = vunpack.c.h.b16 %v637
    %v923 = vunpack.c.l.b16 %v638
    %v924 = vunpack.c.h.b16 %v638
    %v925 = vunpack.c.l.b16 %v639
    %v926 = vunpack.c.h.b16 %v639
    %v927 = vunpack.c.l.b16 %v640
    %v928 = vunpack.c.h.b16 %v640
    %v929 = vunpack.c.l.b16 %v641
    %v930 = vunpack.c.h.b16 %v641
    %v931 = vunpack.c.l.b16 %v642
    %v932 = vunpack.c.h.b16 %v642
    %v933 = vunpack.c.l.b16 %v643
    %v934 = vunpack.c.h.b16 %v643
    %v935 = vunpack.c.l.b16 %v644
    %v936 = vunpack.c.h.b16 %v644
    %v937 = vunpack.c.l.b16 %v645
    %v938 = vunpack.c.h.b16 %v645
    %v939 = vunpack.c.l.b16 %v646
    %v940 = vunpack.c.h.b16 %v646
    %v941 = vunpack.c.l.b16 %v647
    %v942 = vunpack.c.h.b16 %v647
    %v943 = vunpack.c.l.b16 %v648
    %v944 = vunpack.c.h.b16 %v648
    %v945 = vunpack.c.l.b16 %v649
    %v946 = vunpack.c.h.b16 %v649
    %v947 = vunpack.c.l.b16 %v650
    %v948 = vunpack.c.h.b16 %v650
    %v949 = vunpack.c.l.b16 %v651
    %v950 = vunpack.c.h.b16 %v651
    %v951 = vunpack.c.l.b16 %v652
    %v952 = vunpack.c.h.b16 %v652
    %v953 = vunpack.c.l.b16 %v653
    %v954 = vunpack.c.h.b16 %v653
    %v955 = vunpack.c.l.b16 %v654
    %v956 = vunpack.c.h.b16 %v654
    %v957 = vunpack.c.l.b16 %v655
    %v958 = vunpack.c.h.b16 %v655
    %v959 = vunpack.c.l.b16 %v656
    %v960 = vunpack.c.h.b16 %v656
    %v961 = vunpack.c.l.b16 %v657
    %v962 = vunpack.c.h.b16 %v657
    %v963 = vunpack.c.l.b16 %v658
    %v964 = vunpack.c.h.b16 %v658
    %v965 = vunpack.c.l.b16 %v659
    %v966 = vunpack.c.h.b16 %v659
    %v967 = vunpack.c.l.b16 %v660
    %v968 = vunpack.c.h.b16 %v660
    %v969 = vunpack.c.l.b16 %v661
    %v970 = vunpack.c.h.b16 %v661
    %v971 = vunpack.c.l.b16 %v662
    %v972 = vunpack.c.h.b16 %v662
    %v973 = vunpack.c.l.b16 %v663
    %v974 = vunpack.c.h.b16 %v663
    %v975 = vunpack.c.l.b16 %v664
    %v976 = vunpack.c.h.b16 %v664
    %v977 = vunpack.c.l.b16 %v665
    %v978 = vunpack.c.h.b16 %v665
    %v979 = vunpack.c.l.b16 %v666
    %v980 = vunpack.c.h.b16 %v666
    %v981 = vunpack.c.l.b16 %v667
    %v982 = vunpack.c.h.b16 %v667
    %v983 = vunpack.c.l.b16 %v668
    %v984 = vunpack.c.h.b16 %v668
    %v985 = vunpack.c.l.b16 %v669
    %v986 = vunpack.c.h.b16 %v669
    %v987 = vunpack.c.l.b16 %v670
    %v988 = vunpack.c.h.b16 %v670
    %v989 = vunpack.c.l.b16 %v671
    %v990 = vunpack.c.h.b16 %v671
    %v991 = vunpack.c.l.b16 %v672
    %v992 = vunpack.c.h.b16 %v672
    %v993 = vunpack.c.l.b16 %v673
    %v994 = vunpack.c.h.b16 %v673
    %v995 = vunpack.c.l.b16 %v674
    %v996 = vunpack.c.h.b16 %v674
    %v997 = vunpack.c.l.b16 %v675
    %v998 = vunpack.c.h.b16 %v675
    %v999 = vunpack.c.l.b16 %v676
    %v1000 = vunpack.c.h.b16 %v676
    %v1001 = vunpack.c.l.b16 %v677
    %v1002 = vunpack.c.h.b16 %v677
    %v1003 = vunpack.c.l.b16 %v678
    %v1004 = vunpack.c.h.b16 %v678
    %v1005 = vunpack.c.l.b16 %v679
    %v1006 = vunpack.c.h.b16 %v679
    %v1007 = vunpack.c.l.b16 %v680
    %v1008 = vunpack.c.h.b16 %v680
    %v1009 = vunpack.c.l.b16 %v681
    %v1010 = vunpack.c.h.b16 %v681
    %v1011 = vunpack.c.l.b16 %v682
    %v1012 = vunpack.c.h.b16 %v682
    %v1013 = vunpack.c.l.b16 %v683
    %v1014 = vunpack.c.h.b16 %v683
    %v1015 = vunpack.c.l.b16 %v684
    %v1016 = vunpack.c.h.b16 %v684
    %v1017 = vunpack.c.l.b16 %v685
    %v1018 = vunpack.c.h.b16 %v685
    %v1019 = vunpack.c.l.b16 %v686
    %v1020 = vunpack.c.h.b16 %v686
    %v1021 = vunpack.c.l.b16 %v687
    %v1022 = vunpack.c.h.b16 %v687
    %v1023 = vunpack.c.l.b16 %v688
    %v1024 = vunpack.c.h.b16 %v688
    %v1025 = vunpack.c.l.b16 %v689
    %v1026 = vunpack.c.h.b16 %v689
    %v1027 = vunpack.c.l.b16 %v690
    %v1028 = vunpack.c.h.b16 %v690
    %v1029 = vunpack.c.l.b16 %v691
    %v1030 = vunpack.c.h.b16 %v691
    %v1031 = vunpack.c.l.b16 %v692
    %v1032 = vunpack.c.h.b16 %v692
    %v1033 = vunpack.c.l.b16 %v693
    %v1034 = vunpack.c.h.b16 %v693
    %v1035 = vunpack.c.l.b16 %v694
    %v1036 = vunpack.c.h.b16 %v694
    %v1037 = vunpack.c.l.b16 %v695
    %v1038 = vunpack.c.h.b16 %v695
    %v1039 = vunpack.c.l.b16 %v696
    %v1040 = vunpack.c.h.b16 %v696
    %v1041 = vunpack.c.l.b16 %v697
    %v1042 = vunpack.c.h.b16 %v697
    %v1043 = vunpack.c.l.b16 %v698
    %v1044 = vunpack.c.h.b16 %v698
    %v1045 = vunpack.c.l.b16 %v699
    %v1046 = vunpack.c.h.b16 %v699
    %v1047 = vunpack.c.l.b16 %v700
    %v1048 = vunpack.c.h.b16 %v700
    %v1049 = vunpack.c.l.b16 %v701
    %v1050 = vunpack.c.h.b16 %v701
    %v1051 = vunpack.c.l.b16 %v702
    %v1052 = vunpack.c.h.b16 %v702
    %v1053 = vunpack.c.l.b16 %v703
    %v1054 = vunpack.c.h.b16 %v703
    %v1055 = vunpack.c.l.b16 %v704
    %v1056 = vunpack.c.h.b16 %v704
    %v1057 = vunpack.c.l.b16 %v705
    %v1058 = vunpack.c.h.b16 %v705
    %v1059 = vunpack.c.l.b16 %v706
    %v1060 = vunpack.c.h.b16 %v706
    %v1061 = vunpack.c.l.b16 %v707
    %v1062 = vunpack.c.h.b16 %v707
    %v1063 = vunpack.c.l.b16 %v708
    %v1064 = vunpack.c.h.b16 %v708
    %v1065 = vunpack.c.l.b16 %v709
    %v1066 = vunpack.c.h.b16 %v709
    %v1067 = vunpack.c.l.b16 %v710
    %v1068 = vunpack.c.h.b16 %v710
    %v1069 = vunpack.c.l.b16 %v711
    %v1070 = vunpack.c.h.b16 %v711
    %v1071 = vunpack.c.l.b16 %v712
    %v1072 = vunpack.c.h.b16 %v712
    %v1073 = vunpack.c.l.b16 %v713
    %v1074 = vunpack.c.h.b16 %v713
    %v1075 = vunpack.c.l.b16 %v714
    %v1076 = vunpack.c.h.b16 %v714
    %v1077 = vunpack.c.l.b16 %v715
    %v1078 = vunpack.c.h.b16 %v715
    %v1079 = vunpack.c.l.b16 %v716
    %v1080 = vunpack.c.h.b16 %v716
    %v1081 = vunpack.c.l.b16 %v717
    %v1082 = vunpack.c.h.b16 %v717
    %v1083 = vunpack.c.l.b16 %v718
    %v1084 = vunpack.c.h.b16 %v718
    %v1085 = vunpack.c.l.b16 %v719
    %v1086 = vunpack.c.h.b16 %v719
    %v1087 = vunpack.c.l.b16 %v720
    %v1088 = vunpack.c.h.b16 %v720
    %v1089 = vunpack.c.l.b16 %v721
    %v1090 = vunpack.c.h.b16 %v721
    %v1091 = vunpack.c.l.b16 %v722
    %v1092 = vunpack.c.h.b16 %v722
    %v1093 = vunpack.c.l.b16 %v723
    %v1094 = vunpack.c.h.b16 %v723
    %v1095 = vunpack.c.l.b16 %v724
    %v1096 = vunpack.c.h.b16 %v724
    %v1097 = vunpack.c.l.b16 %v725
    %v1098 = vunpack.c.h.b16 %v725
    %v1099 = vunpack.c.l.b16 %v726
    %v1100 = vunpack.c.h.b16 %v726
    %v1101 = vunpack.c.l.b16 %v727
    %v1102 = vunpack.c.h.b16 %v727
    %v1103 = vunpack.c.l.b16 %v728
    %v1104 = vunpack.c.h.b16 %v728
    %v1105 = vunpack.c.l.b16 %v729
    %v1106 = vunpack.c.h.b16 %v729
    %v1107 = vunpack.c.l.b16 %v730
    %v1108 = vunpack.c.h.b16 %v730
    %v1109 = vunpack.c.l.b16 %v731
    %v1110 = vunpack.c.h.b16 %v731
    %v1111 = vunpack.c.l.b16 %v732
    %v1112 = vunpack.c.h.b16 %v732
    %v1113 = vunpack.c.l.b16 %v733
    %v1114 = vunpack.c.h.b16 %v733
    %v1115 = vunpack.c.l.b16 %v734
    %v1116 = vunpack.c.h.b16 %v734
    %v1117 = vunpack.c.l.b16 %v735
    %v1118 = vunpack.c.h.b16 %v735
    %v1119 = vunpack.c.l.b16 %v736
    %v1120 = vunpack.c.h.b16 %v736
    %v1121 = vunpack.c.l.b16 %v737
    %v1122 = vunpack.c.h.b16 %v737
    %v1123 = vunpack.c.l.b16 %v738
    %v1124 = vunpack.c.h.b16 %v738
    %v1125 = vunpack.c.l.b16 %v739
    %v1126 = vunpack.c.h.b16 %v739
    %v1127 = vunpack.c.l.b16 %v740
    %v1128 = vunpack.c.h.b16 %v740
    %v1129 = vunpack.c.l.b16 %v741
    %v1130 = vunpack.c.h.b16 %v741
    %v1131 = vunpack.c.l.b16 %v742
    %v1132 = vunpack.c.h.b16 %v742
    %v1133 = vunpack.c.l.b16 %v743
    %v1134 = vunpack.c.h.b16 %v743
    %v1135 = vunpack.c.l.b16 %v744
    %v1136 = vunpack.c.h.b16 %v744
    %v1137 = vunpack.c.l.b16 %v745
    %v1138 = vunpack.c.h.b16 %v745
    %v1139 = vunpack.c.l.b16 %v746
    %v1140 = vunpack.c.h.b16 %v746
    %v1141 = vunpack.c.l.b16 %v747
    %v1142 = vunpack.c.h.b16 %v747
    %v1143 = vunpack.c.l.b16 %v748
    %v1144 = vunpack.c.h.b16 %v748
    %v1145 = vunpack.c.l.b16 %v749
    %v1146 = vunpack.c.h.b16 %v749
    %v1147 = vunpack.c.l.b16 %v750
    %v1148 = vunpack.c.h.b16 %v750
    %v1149 = vunpack.c.l.b16 %v751
    %v1150 = vunpack.c.h.b16 %v751
    %v1151 = vunpack.c.l.b16 %v752
    %v1152 = vunpack.c.h.b16 %v752
    %v1153 = vunpack.c.l.b16 %v753
    %v1154 = vunpack.c.h.b16 %v753
    %v1155 = vunpack.c.l.b16 %v754
    %v1156 = vunpack.c.h.b16 %v754
    %v1157 = vunpack.c.l.b16 %v755
    %v1158 = vunpack.c.h.b16 %v755
    %v1159 = vunpack.c.l.b16 %v756
    %v1160 = vunpack.c.h.b16 %v756
    %v1161 = vunpack.c.l.b16 %v757
    %v1162 = vunpack.c.h.b16 %v757
    %v1163 = vunpack.c.l.b16 %v758
    %v1164 = vunpack.c.h.b16 %v758
    %v1165 = vpack.c.b16 %v913, %v909
    %v1166 = vpack.c.b16 %v914, %v910
    %v1167 = vpack.c.b16 %v915, %v911
    %v1168 = vpack.c.b16 %v916, %v912
    %v1169 = vpack.c.b16 %v921, %v917
    %v1170 = vpack.c.b16 %v922, %v918
    %v1171 = vpack.c.b16 %v923, %v919
    %v1172 = vpack.c.b16 %v924, %v920
    %v1173 = vpack.c.b16 %v929, %v925
    %v1174 = vpack.c.b16 %v930, %v926
    %v1175 = vpack.c.b16 %v931, %v927
    %v1176 = vpack.c.b16 %v932, %v928
    %v1177 = vpack.c.b16 %v937, %v933
    %v1178 = vpack.c.b16 %v938, %v934
    %v1179 = vpack.c.b16 %v939, %v935
    %v1180 = vpack.c.b16 %v940, %v936
    %v1181 = vpack.c.b16 %v945, %v941
    %v1182 = vpack.c.b16 %v946, %v942
    %v1183 = vpack.c.b16 %v947, %v943
    %v1184 = vpack.c.b16 %v948, %v944
    %v1185 = vpack.c.b16 %v953, %v949
    %v1186 = vpack.c.b16 %v954, %v950
    %v1187 = vpack.c.b16 %v955, %v951
    %v1188 = vpack.c.b16 %v956, %v952
    %v1189 = vpack.c.b16 %v961, %v957
    %v1190 = vpack.c.b16 %v962, %v958
    %v1191 = vpack.c.b16 %v963, %v959
    %v1192 = vpack.c.b16 %v964, %v960
    %v1193 = vpack.c.b16 %v969, %v965
    %v1194 = vpack.c.b16 %v970, %v966
    %v1195 = vpack.c.b16 %v971, %v967
    %v1196 = vpack.c.b16 %v972, %v968
    %v1197 = vpack.c.b16 %v977, %v973
    %v1198 = vpack.c.b16 %v978, %v974
    %v1199 = vpack.c.b16 %v979, %v975
    %v1200 = vpack.c.b16 %v980, %v976
    %v1201 = vpack.c.b16 %v985, %v981
    %v1202 = vpack.c.b16 %v986, %v982
    %v1203 = vpack.c.b16 %v987, %v983
    %v1204 = vpack.c.b16 %v988, %v984
    %v1205 = vpack.c.b16 %v993, %v989
    %v1206 = vpack.c.b16 %v994, %v990
    %v1207 = vpack.c.b16 %v995, %v991
    %v1208 = vpack.c.b16 %v996, %v992
    %v1209 = vpack.c.b16 %v1001, %v997
    %v1210 = vpack.c.b16 %v1002, %v998
    %v1211 = vpack.c.b16 %v1003, %v999
    %v1212 = vpack.c.b16 %v1004, %v1000
    %v1213 = vpack.c.b16 %v1009, %v1005
    %v1214 = vpack.c.b16 %v1010, %v1006
    %v1215 = vpack.c.b16 %v1011, %v1007
    %v1216 = vpack.c.b16 %v1012, %v1008
    %v1217 = vpack.c.b16 %v1017, %v1013
    %v1218 = vpack.c.b16 %v1018, %v1014
    %v1219 = vpack.c.b16 %v1019, %v1015
    %v1220 = vpack.c.b16 %v1020, %v1016
    %v1221 = vpack.c.b16 %v1025, %v1021
    %v1222 = vpack.c.b16 %v1026, %v1022
    %v1223 = vpack.c.b16 %v1027, %v1023
    %v1224 = vpack.c.b16 %v1028, %v1024
    %v1225 = vpack.c.b16 %v1033, %v1029
    %v1226 = vpack.c.b16 %v1034, %v1030
    %v1227 = vpack.c.b16 %v1035, %v1031
    %v1228 = vpack.c.b16 %v1036, %v1032
    %v1229 = vpack.c.b16 %v1041, %v1037
    %v1230 = vpack.c.b16 %v1042, %v1038
    %v1231 = vpack.c.b16 %v1043, %v1039
    %v1232 = vpack.c.b16 %v1044, %v1040
    %v1233 = vpack.c.b16 %v1049, %v1045
    %v1234 = vpack.c.b16 %v1050, %v1046
    %v1235 = vpack.c.b16 %v1051, %v1047
    %v1236 = vpack.c.b16 %v1052, %v1048
    %v1237 = vpack.c.b16 %v1057, %v1053
    %v1238 = vpack.c.b16 %v1058, %v1054
    %v1239 = vpack.c.b16 %v1059, %v1055
    %v1240 = vpack.c.b16 %v1060, %v1056
    %v1241 = vpack.c.b16 %v1065, %v1061
    %v1242 = vpack.c.b16 %v1066, %v1062
    %v1243 = vpack.c.b16 %v1067, %v1063
    %v1244 = vpack.c.b16 %v1068, %v1064
    %v1245 = vpack.c.b16 %v1073, %v1069
    %v1246 = vpack.c.b16 %v1074, %v1070
    %v1247 = vpack.c.b16 %v1075, %v1071
    %v1248 = vpack.c.b16 %v1076, %v1072
    %v1249 = vpack.c.b16 %v1081, %v1077
    %v1250 = vpack.c.b16 %v1082, %v1078
    %v1251 = vpack.c.b16 %v1083, %v1079
    %v1252 = vpack.c.b16 %v1084, %v1080
    %v1253 = vpack.c.b16 %v1089, %v1085
    %v1254 = vpack.c.b16 %v1090, %v1086
    %v1255 = vpack.c.b16 %v1091, %v1087
    %v1256 = vpack.c.b16 %v1092, %v1088
    %v1257 = vpack.c.b16 %v1097, %v1093
    %v1258 = vpack.c.b16 %v1098, %v1094
    %v1259 = vpack.c.b16 %v1099, %v1095
    %v1260 = vpack.c.b16 %v1100, %v1096
    %v1261 = vpack.c.b16 %v1105, %v1101
    %v1262 = vpack.c.b16 %v1106, %v1102
    %v1263 = vpack.c.b16 %v1107, %v1103
    %v1264 = vpack.c.b16 %v1108, %v1104
    %v1265 = vpack.c.b16 %v1113, %v1109
    %v1266 = vpack.c.b16 %v1114, %v1110
    %v1267 = vpack.c.b16 %v1115, %v1111
    %v1268 = vpack.c.b16 %v1116, %v1112
    %v1269 = vpack.c.b16 %v1121, %v1117
    %v1270 = vpack.c.b16 %v1122, %v1118
    %v1271 = vpack.c.b16 %v1123, %v1119
    %v1272 = vpack.c.b16 %v1124, %v1120
    %v1273 = vpack.c.b16 %v1129, %v1125
    %v1274 = vpack.c.b16 %v1130, %v1126
    %v1275 = vpack.c.b16 %v1131, %v1127
    %v1276 = vpack.c.b16 %v1132, %v1128
    %v1277 = vpack.c.b16 %v1137, %v1133
    %v1278 = vpack.c.b16 %v1138, %v1134
    %v1279 = vpack.c.b16 %v1139, %v1135
    %v1280 = vpack.c.b16 %v1140, %v1136
    %v1281 = vpack.c.b16 %v1145, %v1141
    %v1282 = vpack.c.b16 %v1146, %v1142
    %v1283 = vpack.c.b16 %v1147, %v1143
    %v1284 = vpack.c.b16 %v1148, %v1144
    %v1285 = vpack.c.b16 %v1153, %v1149
    %v1286 = vpack.c.b16 %v1154, %v1150
    %v1287 = vpack.c.b16 %v1155, %v1151
    %v1288 = vpack.c.b16 %v1156, %v1152
    %v1289 = vpack.c.b16 %v1161, %v1157
    %v1290 = vpack.c.b16 %v1162, %v1158
    %v1291 = vpack.c.b16 %v1163, %v1159
    %v1292 = vpack.c.b16 %v1164, %v1160
    %1421 = vmatprep.subr.bf16.mxu0 %v1194
    %1422 = vmatpush1.bf16.msra.mxu0 %v1193
    %1423 = vmatprep.subr.bf16.mxu0 %v1190
    %1424 = vmatpush1.bf16.msra.mxu0 %v1189
    %1425 = vmatprep.subr.bf16.mxu0 %v1186
    %1426 = vmatpush1.bf16.msra.mxu0 %v1185
    %1427 = vmatprep.subr.bf16.mxu0 %v1182
    %1428 = vmatpush1.bf16.msra.mxu0 %v1181
    %1429 = vmatprep.subr.bf16.mxu0 %v1178
    %1430 = vmatpush1.bf16.msra.mxu0 %v1177
    %1431 = vmatprep.subr.bf16.mxu0 %v1174
    %1432 = vmatpush1.bf16.msra.mxu0 %v1173
    %1433 = vmatprep.subr.bf16.mxu0 %v1170
    %1434 = vmatpush1.bf16.msra.mxu0 %v1169
    %1435 = vmatprep.subr.bf16.mxu0 %v1166
    %1436 = vmatpush1.bf16.msra.mxu0 %v1165
    %1437 = vmatprep.subr.bf16.mxu0 %v1226
    %1438 = vmatpush2.bf16.msra.mxu0 %v1225
    %1439 = vmatprep.subr.bf16.mxu0 %v1222
    %1440 = vmatpush2.bf16.msra.mxu0 %v1221
    %1441 = vmatprep.subr.bf16.mxu0 %v1218
    %1442 = vmatpush2.bf16.msra.mxu0 %v1217
    %1443 = vmatprep.subr.bf16.mxu0 %v1214
    %1444 = vmatpush2.bf16.msra.mxu0 %v1213
    %1445 = vmatprep.subr.bf16.mxu0 %v1210
    %1446 = vmatpush2.bf16.msra.mxu0 %v1209
    %1447 = vmatprep.subr.bf16.mxu0 %v1206
    %1448 = vmatpush2.bf16.msra.mxu0 %v1205
    %1449 = vmatprep.subr.bf16.mxu0 %v1202
    %1450 = vmatpush2.bf16.msra.mxu0 %v1201
    %1451 = vmatprep.subr.bf16.mxu0 %v1198
    %1452 = vmatpush2.bf16.msra.mxu0 %v1197
    %1453 = vmatprep.mubr.bf16.mxu0 %v628
    %1454 = vmatmul.mubr.bf16.gmra.mxu0 %v627
    %v1455 = vpop.f32.mrf.mxu0
    %v1456 = vadd.f32 %v764, %v1455
    %v1457 = vpop.f32.mrf.mxu0
    %v1458 = vadd.f32 %v768, %v1457
    %v1459 = vpop.f32.mrf.mxu0
    %v1460 = vpop.f32.mrf.mxu0
    %1461 = vdwg.mxu0
    %1462 = vmatprep.subr.bf16.mxu0 %v1258
    %1463 = vmatpush1.bf16.msra.mxu0 %v1257
    %1464 = vmatprep.subr.bf16.mxu0 %v1254
    %1465 = vmatpush1.bf16.msra.mxu0 %v1253
    %1466 = vmatprep.subr.bf16.mxu0 %v1250
    %1467 = vmatpush1.bf16.msra.mxu0 %v1249
    %1468 = vmatprep.subr.bf16.mxu0 %v1246
    %1469 = vmatpush1.bf16.msra.mxu0 %v1245
    %1470 = vmatprep.subr.bf16.mxu0 %v1242
    %1471 = vmatpush1.bf16.msra.mxu0 %v1241
    %1472 = vmatprep.subr.bf16.mxu0 %v1238
    %1473 = vmatpush1.bf16.msra.mxu0 %v1237
    %1474 = vmatprep.subr.bf16.mxu0 %v1234
    %1475 = vmatpush1.bf16.msra.mxu0 %v1233
    %1476 = vmatprep.subr.bf16.mxu0 %v1230
    %1477 = vmatpush1.bf16.msra.mxu0 %v1229
    %1478 = vmatprep.subr.bf16.mxu0 %v1290
    %1479 = vmatpush2.bf16.msra.mxu0 %v1289
    %1480 = vmatprep.subr.bf16.mxu0 %v1286
    %1481 = vmatpush2.bf16.msra.mxu0 %v1285
    %1482 = vmatprep.subr.bf16.mxu0 %v1282
    %1483 = vmatpush2.bf16.msra.mxu0 %v1281
    %1484 = vmatprep.subr.bf16.mxu0 %v1278
    %1485 = vmatpush2.bf16.msra.mxu0 %v1277
    %1486 = vmatprep.subr.bf16.mxu0 %v1274
    %1487 = vmatpush2.bf16.msra.mxu0 %v1273
    %1488 = vmatprep.subr.bf16.mxu0 %v1270
    %1489 = vmatpush2.bf16.msra.mxu0 %v1269
    %1490 = vmatprep.subr.bf16.mxu0 %v1266
    %1491 = vmatpush2.bf16.msra.mxu0 %v1265
    %1492 = vmatprep.subr.bf16.mxu0 %v1262
    %1493 = vmatpush2.bf16.msra.mxu0 %v1261
    %1494 = vmatprep.mubr.bf16.mxu0 %v630
    %1495 = vmatmul.mubr.bf16.gmra.mxu0 %v629
    %v1496 = vpop.f32.mrf.mxu0
    %v1497 = vadd.f32 %v1456, %v1496
    %v1498 = vpop.f32.mrf.mxu0
    %v1499 = vadd.f32 %v1458, %v1498
    %v1500 = vpop.f32.mrf.mxu0
    %v1501 = vpop.f32.mrf.mxu0
    %1502 = vdwg.mxu0
    %1503 = vmatprep.subr.bf16.mxu0 %v1196
    %1504 = vmatpush1.bf16.msra.mxu0 %v1195
    %1505 = vmatprep.subr.bf16.mxu0 %v1192
    %1506 = vmatpush1.bf16.msra.mxu0 %v1191
    %1507 = vmatprep.subr.bf16.mxu0 %v1188
    %1508 = vmatpush1.bf16.msra.mxu0 %v1187
    %1509 = vmatprep.subr.bf16.mxu0 %v1184
    %1510 = vmatpush1.bf16.msra.mxu0 %v1183
    %1511 = vmatprep.subr.bf16.mxu0 %v1180
    %1512 = vmatpush1.bf16.msra.mxu0 %v1179
    %1513 = vmatprep.subr.bf16.mxu0 %v1176
    %1514 = vmatpush1.bf16.msra.mxu0 %v1175
    %1515 = vmatprep.subr.bf16.mxu0 %v1172
    %1516 = vmatpush1.bf16.msra.mxu0 %v1171
    %1517 = vmatprep.subr.bf16.mxu0 %v1168
    %1518 = vmatpush1.bf16.msra.mxu0 %v1167
    %1519 = vmatprep.subr.bf16.mxu0 %v1228
    %1520 = vmatpush2.bf16.msra.mxu0 %v1227
    %1521 = vmatprep.subr.bf16.mxu0 %v1224
    %1522 = vmatpush2.bf16.msra.mxu0 %v1223
    %1523 = vmatprep.subr.bf16.mxu0 %v1220
    %1524 = vmatpush2.bf16.msra.mxu0 %v1219
    %1525 = vmatprep.subr.bf16.mxu0 %v1216
    %1526 = vmatpush2.bf16.msra.mxu0 %v1215
    %1527 = vmatprep.subr.bf16.mxu0 %v1212
    %1528 = vmatpush2.bf16.msra.mxu0 %v1211
    %1529 = vmatprep.subr.bf16.mxu0 %v1208
    %1530 = vmatpush2.bf16.msra.mxu0 %v1207
    %1531 = vmatprep.subr.bf16.mxu0 %v1204
    %1532 = vmatpush2.bf16.msra.mxu0 %v1203
    %1533 = vmatprep.subr.bf16.mxu0 %v1200
    %1534 = vmatpush2.bf16.msra.mxu0 %v1199
    %1535 = vmatprep.mubr.bf16.mxu0 %v628
    %1536 = vmatmul.mubr.bf16.gmra.mxu0 %v627
    %v1537 = vpop.f32.mrf.mxu0
    %v1538 = vadd.f32 %v772, %v1537
    %v1539 = vpop.f32.mrf.mxu0
    %v1540 = vadd.f32 %v776, %v1539
    %v1541 = vpop.f32.mrf.mxu0
    %v1542 = vpop.f32.mrf.mxu0
    %1543 = vdwg.mxu0
    %1544 = vmatprep.subr.bf16.mxu0 %v1260
    %1545 = vmatpush1.bf16.msra.mxu0 %v1259
    %1546 = vmatprep.subr.bf16.mxu0 %v1256
    %1547 = vmatpush1.bf16.msra.mxu0 %v1255
    %1548 = vmatprep.subr.bf16.mxu0 %v1252
    %1549 = vmatpush1.bf16.msra.mxu0 %v1251
    %1550 = vmatprep.subr.bf16.mxu0 %v1248
    %1551 = vmatpush1.bf16.msra.mxu0 %v1247
    %1552 = vmatprep.subr.bf16.mxu0 %v1244
    %1553 = vmatpush1.bf16.msra.mxu0 %v1243
    %1554 = vmatprep.subr.bf16.mxu0 %v1240
    %1555 = vmatpush1.bf16.msra.mxu0 %v1239
    %1556 = vmatprep.subr.bf16.mxu0 %v1236
    %1557 = vmatpush1.bf16.msra.mxu0 %v1235
    %1558 = vmatprep.subr.bf16.mxu0 %v1232
    %1559 = vmatpush1.bf16.msra.mxu0 %v1231
    %1560 = vmatprep.subr.bf16.mxu0 %v1292
    %1561 = vmatpush2.bf16.msra.mxu0 %v1291
    %1562 = vmatprep.subr.bf16.mxu0 %v1288
    %1563 = vmatpush2.bf16.msra.mxu0 %v1287
    %1564 = vmatprep.subr.bf16.mxu0 %v1284
    %1565 = vmatpush2.bf16.msra.mxu0 %v1283
    %1566 = vmatprep.subr.bf16.mxu0 %v1280
    %1567 = vmatpush2.bf16.msra.mxu0 %v1279
    %1568 = vmatprep.subr.bf16.mxu0 %v1276
    %1569 = vmatpush2.bf16.msra.mxu0 %v1275
    %1570 = vmatprep.subr.bf16.mxu0 %v1272
    %1571 = vmatpush2.bf16.msra.mxu0 %v1271
    %1572 = vmatprep.subr.bf16.mxu0 %v1268
    %1573 = vmatpush2.bf16.msra.mxu0 %v1267
    %1574 = vmatprep.subr.bf16.mxu0 %v1264
    %1575 = vmatpush2.bf16.msra.mxu0 %v1263
    %1576 = vmatprep.mubr.bf16.mxu0 %v630
    %1577 = vmatmul.mubr.bf16.gmra.mxu0 %v629
    %v1578 = vpop.f32.mrf.mxu0
    %v1579 = vadd.f32 %v1538, %v1578
    %v1580 = vpop.f32.mrf.mxu0
    %v1581 = vadd.f32 %v1540, %v1580
    %v1582 = vpop.f32.mrf.mxu0
    %v1583 = vpop.f32.mrf.mxu0
    %1584 = vdwg.mxu0
    %v1585 = vmax.f32 %v1497, 0.0
    %v1586 = vmax.f32 %v1499, 0.0
    %v1587 = vmax.f32 %v1579, 0.0
    %v1588 = vmax.f32 %v1581, 0.0
    %v1589 = vpack.c.bf16 %v1585, %v1585
    %v1590 = vpack.c.bf16 %v1586, %v1586
    %v1591 = vpack.c.bf16 %v1587, %v1587
    %v1592 = vpack.c.bf16 %v1588, %v1588
    %v1593 = vld [vmem:[#allocation6] sm:$0xff]
    %v1594 = vld [vmem:[#allocation6 + $0x8] sm:$0xff]
    %v1595 = vld [vmem:[#allocation6 + $0x10] sm:$0xff]
    %v1596 = vld [vmem:[#allocation6 + $0x18] sm:$0xff]
    %v1597 = vld [vmem:[#allocation6 + $0x20] sm:$0xff]
    %v1598 = vld [vmem:[#allocation6 + $0x28] sm:$0xff]
    %v1599 = vld [vmem:[#allocation6 + $0x30] sm:$0xff]
    %v1600 = vld [vmem:[#allocation6 + $0x38] sm:$0xff]
    %v1601 = vld [vmem:[#allocation6 + $0x40] sm:$0xff]
    %v1602 = vld [vmem:[#allocation6 + $0x48] sm:$0xff]
    %v1603 = vld [vmem:[#allocation6 + $0x50] sm:$0xff]
    %v1604 = vld [vmem:[#allocation6 + $0x58] sm:$0xff]
    %v1605 = vld [vmem:[#allocation6 + $0x60] sm:$0xff]
    %v1606 = vld [vmem:[#allocation6 + $0x68] sm:$0xff]
    %v1607 = vld [vmem:[#allocation6 + $0x70] sm:$0xff]
    %v1608 = vld [vmem:[#allocation6 + $0x78] sm:$0xff]
    %v1609 = vld [vmem:[#allocation6 + $0x80] sm:$0xff]
    %v1610 = vld [vmem:[#allocation6 + $0x88] sm:$0xff]
    %v1611 = vld [vmem:[#allocation6 + $0x90] sm:$0xff]
    %v1612 = vld [vmem:[#allocation6 + $0x98] sm:$0xff]
    %v1613 = vld [vmem:[#allocation6 + $0xa0] sm:$0xff]
    %v1614 = vld [vmem:[#allocation6 + $0xa8] sm:$0xff]
    %v1615 = vld [vmem:[#allocation6 + $0xb0] sm:$0xff]
    %v1616 = vld [vmem:[#allocation6 + $0xb8] sm:$0xff]
    %v1617 = vld [vmem:[#allocation6 + $0xc0] sm:$0xff]
    %v1618 = vld [vmem:[#allocation6 + $0xc8] sm:$0xff]
    %v1619 = vld [vmem:[#allocation6 + $0xd0] sm:$0xff]
    %v1620 = vld [vmem:[#allocation6 + $0xd8] sm:$0xff]
    %v1621 = vld [vmem:[#allocation6 + $0xe0] sm:$0xff]
    %v1622 = vld [vmem:[#allocation6 + $0xe8] sm:$0xff]
    %v1623 = vld [vmem:[#allocation6 + $0xf0] sm:$0xff]
    %v1624 = vld [vmem:[#allocation6 + $0xf8] sm:$0xff]
    %v1625 = vld [vmem:[#allocation6 + $0x100] sm:$0xff]
    %v1626 = vld [vmem:[#allocation6 + $0x108] sm:$0xff]
    %v1627 = vld [vmem:[#allocation6 + $0x110] sm:$0xff]
    %v1628 = vld [vmem:[#allocation6 + $0x118] sm:$0xff]
    %v1629 = vld [vmem:[#allocation6 + $0x120] sm:$0xff]
    %v1630 = vld [vmem:[#allocation6 + $0x128] sm:$0xff]
    %v1631 = vld [vmem:[#allocation6 + $0x130] sm:$0xff]
    %v1632 = vld [vmem:[#allocation6 + $0x138] sm:$0xff]
    %v1633 = vld [vmem:[#allocation6 + $0x140] sm:$0xff]
    %v1634 = vld [vmem:[#allocation6 + $0x148] sm:$0xff]
    %v1635 = vld [vmem:[#allocation6 + $0x150] sm:$0xff]
    %v1636 = vld [vmem:[#allocation6 + $0x158] sm:$0xff]
    %v1637 = vld [vmem:[#allocation6 + $0x160] sm:$0xff]
    %v1638 = vld [vmem:[#allocation6 + $0x168] sm:$0xff]
    %v1639 = vld [vmem:[#allocation6 + $0x170] sm:$0xff]
    %v1640 = vld [vmem:[#allocation6 + $0x178] sm:$0xff]
    %v1641 = vld [vmem:[#allocation6 + $0x180] sm:$0xff]
    %v1642 = vld [vmem:[#allocation6 + $0x188] sm:$0xff]
    %v1643 = vld [vmem:[#allocation6 + $0x190] sm:$0xff]
    %v1644 = vld [vmem:[#allocation6 + $0x198] sm:$0xff]
    %v1645 = vld [vmem:[#allocation6 + $0x1a0] sm:$0xff]
    %v1646 = vld [vmem:[#allocation6 + $0x1a8] sm:$0xff]
    %v1647 = vld [vmem:[#allocation6 + $0x1b0] sm:$0xff]
    %v1648 = vld [vmem:[#allocation6 + $0x1b8] sm:$0xff]
    %v1649 = vld [vmem:[#allocation6 + $0x1c0] sm:$0xff]
    %v1650 = vld [vmem:[#allocation6 + $0x1c8] sm:$0xff]
    %v1651 = vld [vmem:[#allocation6 + $0x1d0] sm:$0xff]
    %v1652 = vld [vmem:[#allocation6 + $0x1d8] sm:$0xff]
    %v1653 = vld [vmem:[#allocation6 + $0x1e0] sm:$0xff]
    %v1654 = vld [vmem:[#allocation6 + $0x1e8] sm:$0xff]
    %v1655 = vld [vmem:[#allocation6 + $0x1f0] sm:$0xff]
    %v1656 = vld [vmem:[#allocation6 + $0x1f8] sm:$0xff]
    %v1657 = vld [vmem:[%s6] sm:$0x3]
    %v1659 = vlaneseq
    %v1660 = vshrl.u32 %v1659, 7
    %v1661 = vsub.s32 0, %v1660
    %v1662 = vrot.slane %v1657, %v1661
    %v1663 = vlaneseq
    %v1664 = vshrl.u32 %v1663, 7
    %v1665 = vsub.s32 1, %v1664
    %v1666 = vrot.slane %v1657, %v1665
    %v1733 = vunpack.c.l.b16 %v1593
    %v1734 = vunpack.c.h.b16 %v1593
    %v1735 = vunpack.c.l.b16 %v1594
    %v1736 = vunpack.c.h.b16 %v1594
    %v1737 = vunpack.c.l.b16 %v1595
    %v1738 = vunpack.c.h.b16 %v1595
    %v1739 = vunpack.c.l.b16 %v1596
    %v1740 = vunpack.c.h.b16 %v1596
    %v1741 = vunpack.c.l.b16 %v1597
    %v1742 = vunpack.c.h.b16 %v1597
    %v1743 = vunpack.c.l.b16 %v1598
    %v1744 = vunpack.c.h.b16 %v1598
    %v1745 = vunpack.c.l.b16 %v1599
    %v1746 = vunpack.c.h.b16 %v1599
    %v1747 = vunpack.c.l.b16 %v1600
    %v1748 = vunpack.c.h.b16 %v1600
    %v1749 = vunpack.c.l.b16 %v1601
    %v1750 = vunpack.c.h.b16 %v1601
    %v1751 = vunpack.c.l.b16 %v1602
    %v1752 = vunpack.c.h.b16 %v1602
    %v1753 = vunpack.c.l.b16 %v1603
    %v1754 = vunpack.c.h.b16 %v1603
    %v1755 = vunpack.c.l.b16 %v1604
    %v1756 = vunpack.c.h.b16 %v1604
    %v1757 = vunpack.c.l.b16 %v1605
    %v1758 = vunpack.c.h.b16 %v1605
    %v1759 = vunpack.c.l.b16 %v1606
    %v1760 = vunpack.c.h.b16 %v1606
    %v1761 = vunpack.c.l.b16 %v1607
    %v1762 = vunpack.c.h.b16 %v1607
    %v1763 = vunpack.c.l.b16 %v1608
    %v1764 = vunpack.c.h.b16 %v1608
    %v1765 = vunpack.c.l.b16 %v1609
    %v1766 = vunpack.c.h.b16 %v1609
    %v1767 = vunpack.c.l.b16 %v1610
    %v1768 = vunpack.c.h.b16 %v1610
    %v1769 = vunpack.c.l.b16 %v1611
    %v1770 = vunpack.c.h.b16 %v1611
    %v1771 = vunpack.c.l.b16 %v1612
    %v1772 = vunpack.c.h.b16 %v1612
    %v1773 = vunpack.c.l.b16 %v1613
    %v1774 = vunpack.c.h.b16 %v1613
    %v1775 = vunpack.c.l.b16 %v1614
    %v1776 = vunpack.c.h.b16 %v1614
    %v1777 = vunpack.c.l.b16 %v1615
    %v1778 = vunpack.c.h.b16 %v1615
    %v1779 = vunpack.c.l.b16 %v1616
    %v1780 = vunpack.c.h.b16 %v1616
    %v1781 = vunpack.c.l.b16 %v1617
    %v1782 = vunpack.c.h.b16 %v1617
    %v1783 = vunpack.c.l.b16 %v1618
    %v1784 = vunpack.c.h.b16 %v1618
    %v1785 = vunpack.c.l.b16 %v1619
    %v1786 = vunpack.c.h.b16 %v1619
    %v1787 = vunpack.c.l.b16 %v1620
    %v1788 = vunpack.c.h.b16 %v1620
    %v1789 = vunpack.c.l.b16 %v1621
    %v1790 = vunpack.c.h.b16 %v1621
    %v1791 = vunpack.c.l.b16 %v1622
    %v1792 = vunpack.c.h.b16 %v1622
    %v1793 = vunpack.c.l.b16 %v1623
    %v1794 = vunpack.c.h.b16 %v1623
    %v1795 = vunpack.c.l.b16 %v1624
    %v1796 = vunpack.c.h.b16 %v1624
    %v1797 = vunpack.c.l.b16 %v1625
    %v1798 = vunpack.c.h.b16 %v1625
    %v1799 = vunpack.c.l.b16 %v1626
    %v1800 = vunpack.c.h.b16 %v1626
    %v1801 = vunpack.c.l.b16 %v1627
    %v1802 = vunpack.c.h.b16 %v1627
    %v1803 = vunpack.c.l.b16 %v1628
    %v1804 = vunpack.c.h.b16 %v1628
    %v1805 = vunpack.c.l.b16 %v1629
    %v1806 = vunpack.c.h.b16 %v1629
    %v1807 = vunpack.c.l.b16 %v1630
    %v1808 = vunpack.c.h.b16 %v1630
    %v1809 = vunpack.c.l.b16 %v1631
    %v1810 = vunpack.c.h.b16 %v1631
    %v1811 = vunpack.c.l.b16 %v1632
    %v1812 = vunpack.c.h.b16 %v1632
    %v1813 = vunpack.c.l.b16 %v1633
    %v1814 = vunpack.c.h.b16 %v1633
    %v1815 = vunpack.c.l.b16 %v1634
    %v1816 = vunpack.c.h.b16 %v1634
    %v1817 = vunpack.c.l.b16 %v1635
    %v1818 = vunpack.c.h.b16 %v1635
    %v1819 = vunpack.c.l.b16 %v1636
    %v1820 = vunpack.c.h.b16 %v1636
    %v1821 = vunpack.c.l.b16 %v1637
    %v1822 = vunpack.c.h.b16 %v1637
    %v1823 = vunpack.c.l.b16 %v1638
    %v1824 = vunpack.c.h.b16 %v1638
    %v1825 = vunpack.c.l.b16 %v1639
    %v1826 = vunpack.c.h.b16 %v1639
    %v1827 = vunpack.c.l.b16 %v1640
    %v1828 = vunpack.c.h.b16 %v1640
    %v1829 = vunpack.c.l.b16 %v1641
    %v1830 = vunpack.c.h.b16 %v1641
    %v1831 = vunpack.c.l.b16 %v1642
    %v1832 = vunpack.c.h.b16 %v1642
    %v1833 = vunpack.c.l.b16 %v1643
    %v1834 = vunpack.c.h.b16 %v1643
    %v1835 = vunpack.c.l.b16 %v1644
    %v1836 = vunpack.c.h.b16 %v1644
    %v1837 = vunpack.c.l.b16 %v1645
    %v1838 = vunpack.c.h.b16 %v1645
    %v1839 = vunpack.c.l.b16 %v1646
    %v1840 = vunpack.c.h.b16 %v1646
    %v1841 = vunpack.c.l.b16 %v1647
    %v1842 = vunpack.c.h.b16 %v1647
    %v1843 = vunpack.c.l.b16 %v1648
    %v1844 = vunpack.c.h.b16 %v1648
    %v1845 = vunpack.c.l.b16 %v1649
    %v1846 = vunpack.c.h.b16 %v1649
    %v1847 = vunpack.c.l.b16 %v1650
    %v1848 = vunpack.c.h.b16 %v1650
    %v1849 = vunpack.c.l.b16 %v1651
    %v1850 = vunpack.c.h.b16 %v1651
    %v1851 = vunpack.c.l.b16 %v1652
    %v1852 = vunpack.c.h.b16 %v1652
    %v1853 = vunpack.c.l.b16 %v1653
    %v1854 = vunpack.c.h.b16 %v1653
    %v1855 = vunpack.c.l.b16 %v1654
    %v1856 = vunpack.c.h.b16 %v1654
    %v1857 = vunpack.c.l.b16 %v1655
    %v1858 = vunpack.c.h.b16 %v1655
    %v1859 = vunpack.c.l.b16 %v1656
    %v1860 = vunpack.c.h.b16 %v1656
    %v1861 = vpack.c.b16 %v1735, %v1733
    %v1862 = vpack.c.b16 %v1736, %v1734
    %v1863 = vpack.c.b16 %v1739, %v1737
    %v1864 = vpack.c.b16 %v1740, %v1738
    %v1865 = vpack.c.b16 %v1743, %v1741
    %v1866 = vpack.c.b16 %v1744, %v1742
    %v1867 = vpack.c.b16 %v1747, %v1745
    %v1868 = vpack.c.b16 %v1748, %v1746
    %v1869 = vpack.c.b16 %v1751, %v1749
    %v1870 = vpack.c.b16 %v1752, %v1750
    %v1871 = vpack.c.b16 %v1755, %v1753
    %v1872 = vpack.c.b16 %v1756, %v1754
    %v1873 = vpack.c.b16 %v1759, %v1757
    %v1874 = vpack.c.b16 %v1760, %v1758
    %v1875 = vpack.c.b16 %v1763, %v1761
    %v1876 = vpack.c.b16 %v1764, %v1762
    %v1877 = vpack.c.b16 %v1767, %v1765
    %v1878 = vpack.c.b16 %v1768, %v1766
    %v1879 = vpack.c.b16 %v1771, %v1769
    %v1880 = vpack.c.b16 %v1772, %v1770
    %v1881 = vpack.c.b16 %v1775, %v1773
    %v1882 = vpack.c.b16 %v1776, %v1774
    %v1883 = vpack.c.b16 %v1779, %v1777
    %v1884 = vpack.c.b16 %v1780, %v1778
    %v1885 = vpack.c.b16 %v1783, %v1781
    %v1886 = vpack.c.b16 %v1784, %v1782
    %v1887 = vpack.c.b16 %v1787, %v1785
    %v1888 = vpack.c.b16 %v1788, %v1786
    %v1889 = vpack.c.b16 %v1791, %v1789
    %v1890 = vpack.c.b16 %v1792, %v1790
    %v1891 = vpack.c.b16 %v1795, %v1793
    %v1892 = vpack.c.b16 %v1796, %v1794
    %v1893 = vpack.c.b16 %v1799, %v1797
    %v1894 = vpack.c.b16 %v1800, %v1798
    %v1895 = vpack.c.b16 %v1803, %v1801
    %v1896 = vpack.c.b16 %v1804, %v1802
    %v1897 = vpack.c.b16 %v1807, %v1805
    %v1898 = vpack.c.b16 %v1808, %v1806
    %v1899 = vpack.c.b16 %v1811, %v1809
    %v1900 = vpack.c.b16 %v1812, %v1810
    %v1901 = vpack.c.b16 %v1815, %v1813
    %v1902 = vpack.c.b16 %v1816, %v1814
    %v1903 = vpack.c.b16 %v1819, %v1817
    %v1904 = vpack.c.b16 %v1820, %v1818
    %v1905 = vpack.c.b16 %v1823, %v1821
    %v1906 = vpack.c.b16 %v1824, %v1822
    %v1907 = vpack.c.b16 %v1827, %v1825
    %v1908 = vpack.c.b16 %v1828, %v1826
    %v1909 = vpack.c.b16 %v1831, %v1829
    %v1910 = vpack.c.b16 %v1832, %v1830
    %v1911 = vpack.c.b16 %v1835, %v1833
    %v1912 = vpack.c.b16 %v1836, %v1834
    %v1913 = vpack.c.b16 %v1839, %v1837
    %v1914 = vpack.c.b16 %v1840, %v1838
    %v1915 = vpack.c.b16 %v1843, %v1841
    %v1916 = vpack.c.b16 %v1844, %v1842
    %v1917 = vpack.c.b16 %v1847, %v1845
    %v1918 = vpack.c.b16 %v1848, %v1846
    %v1919 = vpack.c.b16 %v1851, %v1849
    %v1920 = vpack.c.b16 %v1852, %v1850
    %v1921 = vpack.c.b16 %v1855, %v1853
    %v1922 = vpack.c.b16 %v1856, %v1854
    %v1923 = vpack.c.b16 %v1859, %v1857
    %v1924 = vpack.c.b16 %v1860, %v1858
    %1989 = vmatprep.subr.bf16.mxu0 %v1876
    %1990 = vmatpush1.bf16.msra.mxu0 %v1875
    %1991 = vmatprep.subr.bf16.mxu0 %v1874
    %1992 = vmatpush1.bf16.msra.mxu0 %v1873
    %1993 = vmatprep.subr.bf16.mxu0 %v1872
    %1994 = vmatpush1.bf16.msra.mxu0 %v1871
    %1995 = vmatprep.subr.bf16.mxu0 %v1870
    %1996 = vmatpush1.bf16.msra.mxu0 %v1869
    %1997 = vmatprep.subr.bf16.mxu0 %v1868
    %1998 = vmatpush1.bf16.msra.mxu0 %v1867
    %1999 = vmatprep.subr.bf16.mxu0 %v1866
    %2000 = vmatpush1.bf16.msra.mxu0 %v1865
    %2001 = vmatprep.subr.bf16.mxu0 %v1864
    %2002 = vmatpush1.bf16.msra.mxu0 %v1863
    %2003 = vmatprep.subr.bf16.mxu0 %v1862
    %2004 = vmatpush1.bf16.msra.mxu0 %v1861
    %2005 = vmatprep.subr.bf16.mxu0 %v1892
    %2006 = vmatpush2.bf16.msra.mxu0 %v1891
    %2007 = vmatprep.subr.bf16.mxu0 %v1890
    %2008 = vmatpush2.bf16.msra.mxu0 %v1889
    %2009 = vmatprep.subr.bf16.mxu0 %v1888
    %2010 = vmatpush2.bf16.msra.mxu0 %v1887
    %2011 = vmatprep.subr.bf16.mxu0 %v1886
    %2012 = vmatpush2.bf16.msra.mxu0 %v1885
    %2013 = vmatprep.subr.bf16.mxu0 %v1884
    %2014 = vmatpush2.bf16.msra.mxu0 %v1883
    %2015 = vmatprep.subr.bf16.mxu0 %v1882
    %2016 = vmatpush2.bf16.msra.mxu0 %v1881
    %2017 = vmatprep.subr.bf16.mxu0 %v1880
    %2018 = vmatpush2.bf16.msra.mxu0 %v1879
    %2019 = vmatprep.subr.bf16.mxu0 %v1878
    %2020 = vmatpush2.bf16.msra.mxu0 %v1877
    %2021 = vmatprep.mubr.bf16.mxu0 %v1590
    %2022 = vmatmul.mubr.bf16.gmra.mxu0 %v1589
    %v2023 = vpop.f32.mrf.mxu0
    %v2024 = vadd.f32 %v1662, %v2023
    %v2025 = vpop.f32.mrf.mxu0
    %v2026 = vadd.f32 %v1666, %v2025
    %v2027 = vpop.f32.mrf.mxu0
    %v2028 = vpop.f32.mrf.mxu0
    %2029 = vdwg.mxu0
    %2030 = vmatprep.subr.bf16.mxu0 %v1908
    %2031 = vmatpush1.bf16.msra.mxu0 %v1907
    %2032 = vmatprep.subr.bf16.mxu0 %v1906
    %2033 = vmatpush1.bf16.msra.mxu0 %v1905
    %2034 = vmatprep.subr.bf16.mxu0 %v1904
    %2035 = vmatpush1.bf16.msra.mxu0 %v1903
    %2036 = vmatprep.subr.bf16.mxu0 %v1902
    %2037 = vmatpush1.bf16.msra.mxu0 %v1901
    %2038 = vmatprep.subr.bf16.mxu0 %v1900
    %2039 = vmatpush1.bf16.msra.mxu0 %v1899
    %2040 = vmatprep.subr.bf16.mxu0 %v1898
    %2041 = vmatpush1.bf16.msra.mxu0 %v1897
    %2042 = vmatprep.subr.bf16.mxu0 %v1896
    %2043 = vmatpush1.bf16.msra.mxu0 %v1895
    %2044 = vmatprep.subr.bf16.mxu0 %v1894
    %2045 = vmatpush1.bf16.msra.mxu0 %v1893
    %2046 = vmatprep.subr.bf16.mxu0 %v1924
    %2047 = vmatpush2.bf16.msra.mxu0 %v1923
    %2048 = vmatprep.subr.bf16.mxu0 %v1922
    %2049 = vmatpush2.bf16.msra.mxu0 %v1921
    %2050 = vmatprep.subr.bf16.mxu0 %v1920
    %2051 = vmatpush2.bf16.msra.mxu0 %v1919
    %2052 = vmatprep.subr.bf16.mxu0 %v1918
    %2053 = vmatpush2.bf16.msra.mxu0 %v1917
    %2054 = vmatprep.subr.bf16.mxu0 %v1916
    %2055 = vmatpush2.bf16.msra.mxu0 %v1915
    %2056 = vmatprep.subr.bf16.mxu0 %v1914
    %2057 = vmatpush2.bf16.msra.mxu0 %v1913
    %2058 = vmatprep.subr.bf16.mxu0 %v1912
    %2059 = vmatpush2.bf16.msra.mxu0 %v1911
    %2060 = vmatprep.subr.bf16.mxu0 %v1910
    %2061 = vmatpush2.bf16.msra.mxu0 %v1909
    %2062 = vmatprep.mubr.bf16.mxu0 %v1592
    %2063 = vmatmul.mubr.bf16.gmra.mxu0 %v1591
    %v2064 = vpop.f32.mrf.mxu0
    %v2065 = vadd.f32 %v2024, %v2064
    %v2066 = vpop.f32.mrf.mxu0
    %v2067 = vadd.f32 %v2026, %v2066
    %v2068 = vpop.f32.mrf.mxu0
    %v2069 = vpop.f32.mrf.mxu0
    %2070 = vdwg.mxu0
    %v2071 = vmax.f32 %v2065, 0.0
    %v2072 = vmax.f32 %v2067, 0.0
    %v2073 = vpack.c.bf16 %v2071, %v2071
    %v2074 = vpack.c.bf16 %v2072, %v2072
    %v2075 = vld [vmem:[#allocation7] sm:$0xf]
    %v2076 = vld [vmem:[#allocation7 + $0x4] sm:$0xf]
    %v2077 = vld [vmem:[#allocation7 + $0x8] sm:$0xf]
    %v2078 = vld [vmem:[#allocation7 + $0xc] sm:$0xf]
    %v2079 = vld [vmem:[#allocation7 + $0x10] sm:$0xf]
    %v2080 = vld [vmem:[#allocation7 + $0x14] sm:$0xf]
    %v2081 = vld [vmem:[#allocation7 + $0x18] sm:$0xf]
    %v2082 = vld [vmem:[#allocation7 + $0x1c] sm:$0xf]
    %v2083 = vld [vmem:[#allocation7 + $0x20] sm:$0xf]
    %v2084 = vld [vmem:[#allocation7 + $0x24] sm:$0xf]
    %v2085 = vld [vmem:[#allocation7 + $0x28] sm:$0xf]
    %v2086 = vld [vmem:[#allocation7 + $0x2c] sm:$0xf]
    %v2087 = vld [vmem:[#allocation7 + $0x30] sm:$0xf]
    %v2088 = vld [vmem:[#allocation7 + $0x34] sm:$0xf]
    %v2089 = vld [vmem:[#allocation7 + $0x38] sm:$0xf]
    %v2090 = vld [vmem:[#allocation7 + $0x3c] sm:$0xf]
    %v2091 = vld [vmem:[#allocation7 + $0x40] sm:$0xf]
    %v2092 = vld [vmem:[#allocation7 + $0x44] sm:$0xf]
    %v2093 = vld [vmem:[#allocation7 + $0x48] sm:$0xf]
    %v2094 = vld [vmem:[#allocation7 + $0x4c] sm:$0xf]
    %v2095 = vld [vmem:[#allocation7 + $0x50] sm:$0xf]
    %v2096 = vld [vmem:[#allocation7 + $0x54] sm:$0xf]
    %v2097 = vld [vmem:[#allocation7 + $0x58] sm:$0xf]
    %v2098 = vld [vmem:[#allocation7 + $0x5c] sm:$0xf]
    %v2099 = vld [vmem:[#allocation7 + $0x60] sm:$0xf]
    %v2100 = vld [vmem:[#allocation7 + $0x64] sm:$0xf]
    %v2101 = vld [vmem:[#allocation7 + $0x68] sm:$0xf]
    %v2102 = vld [vmem:[#allocation7 + $0x6c] sm:$0xf]
    %v2103 = vld [vmem:[#allocation7 + $0x70] sm:$0xf]
    %v2104 = vld [vmem:[#allocation7 + $0x74] sm:$0xf]
    %v2105 = vld [vmem:[#allocation7 + $0x78] sm:$0xf]
    %v2106 = vld [vmem:[#allocation7 + $0x7c] sm:$0xf]
    %v2107 = vld [vmem:[%s8] sm:$0x1]
    %v2109 = vlaneseq
    %v2110 = vshrl.u32 %v2109, 7
    %v2111 = vsub.s32 0, %v2110
    %v2112 = vrot.slane %v2107, %v2111
    %v2146 = vunpack.c.l.b16 %v2075
    %v2147 = vunpack.c.l.b16 %v2076
    %v2148 = vunpack.c.l.b16 %v2077
    %v2149 = vunpack.c.l.b16 %v2078
    %v2150 = vunpack.c.l.b16 %v2079
    %v2151 = vunpack.c.l.b16 %v2080
    %v2152 = vunpack.c.l.b16 %v2081
    %v2153 = vunpack.c.l.b16 %v2082
    %v2154 = vunpack.c.l.b16 %v2083
    %v2155 = vunpack.c.l.b16 %v2084
    %v2156 = vunpack.c.l.b16 %v2085
    %v2157 = vunpack.c.l.b16 %v2086
    %v2158 = vunpack.c.l.b16 %v2087
    %v2159 = vunpack.c.l.b16 %v2088
    %v2160 = vunpack.c.l.b16 %v2089
    %v2161 = vunpack.c.l.b16 %v2090
    %v2162 = vunpack.c.l.b16 %v2091
    %v2163 = vunpack.c.l.b16 %v2092
    %v2164 = vunpack.c.l.b16 %v2093
    %v2165 = vunpack.c.l.b16 %v2094
    %v2166 = vunpack.c.l.b16 %v2095
    %v2167 = vunpack.c.l.b16 %v2096
    %v2168 = vunpack.c.l.b16 %v2097
    %v2169 = vunpack.c.l.b16 %v2098
    %v2170 = vunpack.c.l.b16 %v2099
    %v2171 = vunpack.c.l.b16 %v2100
    %v2172 = vunpack.c.l.b16 %v2101
    %v2173 = vunpack.c.l.b16 %v2102
    %v2174 = vunpack.c.l.b16 %v2103
    %v2175 = vunpack.c.l.b16 %v2104
    %v2176 = vunpack.c.l.b16 %v2105
    %v2177 = vunpack.c.l.b16 %v2106
    %v2178 = vpack.c.b16 %v2147, %v2146
    %v2179 = vpack.c.b16 %v2149, %v2148
    %v2180 = vpack.c.b16 %v2151, %v2150
    %v2181 = vpack.c.b16 %v2153, %v2152
    %v2182 = vpack.c.b16 %v2155, %v2154
    %v2183 = vpack.c.b16 %v2157, %v2156
    %v2184 = vpack.c.b16 %v2159, %v2158
    %v2185 = vpack.c.b16 %v2161, %v2160
    %v2186 = vpack.c.b16 %v2163, %v2162
    %v2187 = vpack.c.b16 %v2165, %v2164
    %v2188 = vpack.c.b16 %v2167, %v2166
    %v2189 = vpack.c.b16 %v2169, %v2168
    %v2190 = vpack.c.b16 %v2171, %v2170
    %v2191 = vpack.c.b16 %v2173, %v2172
    %v2192 = vpack.c.b16 %v2175, %v2174
    %v2193 = vpack.c.b16 %v2177, %v2176
    %2210 = vmatprep.subr.bf16.mxu0 0
    %2211 = vmatpush1.bf16.msra.mxu0 %v2185
    %2212 = vmatprep.subr.bf16.mxu0 0
    %2213 = vmatpush1.bf16.msra.mxu0 %v2184
    %2214 = vmatprep.subr.bf16.mxu0 0
    %2215 = vmatpush1.bf16.msra.mxu0 %v2183
    %2216 = vmatprep.subr.bf16.mxu0 0
    %2217 = vmatpush1.bf16.msra.mxu0 %v2182
    %2218 = vmatprep.subr.bf16.mxu0 0
    %2219 = vmatpush1.bf16.msra.mxu0 %v2181
    %2220 = vmatprep.subr.bf16.mxu0 0
    %2221 = vmatpush1.bf16.msra.mxu0 %v2180
    %2222 = vmatprep.subr.bf16.mxu0 0
    %2223 = vmatpush1.bf16.msra.mxu0 %v2179
    %2224 = vmatprep.subr.bf16.mxu0 0
    %2225 = vmatpush1.bf16.msra.mxu0 %v2178
    %2226 = vmatprep.subr.bf16.mxu0 0
    %2227 = vmatpush2.bf16.msra.mxu0 %v2193
    %2228 = vmatprep.subr.bf16.mxu0 0
    %2229 = vmatpush2.bf16.msra.mxu0 %v2192
    %2230 = vmatprep.subr.bf16.mxu0 0
    %2231 = vmatpush2.bf16.msra.mxu0 %v2191
    %2232 = vmatprep.subr.bf16.mxu0 0
    %2233 = vmatpush2.bf16.msra.mxu0 %v2190
    %2234 = vmatprep.subr.bf16.mxu0 0
    %2235 = vmatpush2.bf16.msra.mxu0 %v2189
    %2236 = vmatprep.subr.bf16.mxu0 0
    %2237 = vmatpush2.bf16.msra.mxu0 %v2188
    %2238 = vmatprep.subr.bf16.mxu0 0
    %2239 = vmatpush2.bf16.msra.mxu0 %v2187
    %2240 = vmatprep.subr.bf16.mxu0 0
    %2241 = vmatpush2.bf16.msra.mxu0 %v2186
    %2242 = vmatprep.mubr.bf16.mxu0 %v2074
    %2243 = vmatmul.mubr.bf16.gmra.mxu0 %v2073
    %v2244 = vpop.f32.mrf.mxu0
    %v2245 = vadd.f32 %v2112, %v2244
    %v2246 = vpop.f32.mrf.mxu0
    %v2247 = vpop.f32.mrf.mxu0
    %v2248 = vpop.f32.mrf.mxu0
    %2249 = vdwg.mxu0
    %v2250 = vmax.f32 %v2245, 0.0
    %v2251 = vpack.c.bf16 %v2250, %v2250
    %v2252 = vld [vmem:[#allocation9] sm:$0xf]
    %v2253 = vld [vmem:[#allocation9 + $0x4] sm:$0xf]
    %v2254 = vld [vmem:[#allocation9 + $0x8] sm:$0xf]
    %v2255 = vld [vmem:[#allocation9 + $0xc] sm:$0xf]
    %v2256 = vld [vmem:[#allocation9 + $0x10] sm:$0xf]
    %v2257 = vld [vmem:[#allocation9 + $0x14] sm:$0xf]
    %v2258 = vld [vmem:[#allocation9 + $0x18] sm:$0xf]
    %v2259 = vld [vmem:[#allocation9 + $0x1c] sm:$0xf]
    %v2260 = vld [vmem:[#allocation9 + $0x20] sm:$0xf]
    %v2261 = vld [vmem:[#allocation9 + $0x24] sm:$0xf]
    %v2262 = vld [vmem:[#allocation9 + $0x28] sm:$0xf]
    %v2263 = vld [vmem:[#allocation9 + $0x2c] sm:$0xf]
    %v2264 = vld [vmem:[#allocation9 + $0x30] sm:$0xf]
    %v2265 = vld [vmem:[#allocation9 + $0x34] sm:$0xf]
    %v2266 = vld [vmem:[#allocation9 + $0x38] sm:$0xf]
    %v2267 = vld [vmem:[#allocation9 + $0x3c] sm:$0xf]
    %v2268 = vld [vmem:[%s10] sm:$0x1]
    %v2270 = vlaneseq
    %v2271 = vshrl.u32 %v2270, 7
    %v2272 = vsub.s32 0, %v2271
    %v2273 = vrot.slane %v2268, %v2272
    %v2291 = vunpack.c.l.b16 %v2252
    %v2292 = vunpack.c.l.b16 %v2253
    %v2293 = vunpack.c.l.b16 %v2254
    %v2294 = vunpack.c.l.b16 %v2255
    %v2295 = vunpack.c.l.b16 %v2256
    %v2296 = vunpack.c.l.b16 %v2257
    %v2297 = vunpack.c.l.b16 %v2258
    %v2298 = vunpack.c.l.b16 %v2259
    %v2299 = vunpack.c.l.b16 %v2260
    %v2300 = vunpack.c.l.b16 %v2261
    %v2301 = vunpack.c.l.b16 %v2262
    %v2302 = vunpack.c.l.b16 %v2263
    %v2303 = vunpack.c.l.b16 %v2264
    %v2304 = vunpack.c.l.b16 %v2265
    %v2305 = vunpack.c.l.b16 %v2266
    %v2306 = vunpack.c.l.b16 %v2267
    %v2307 = vpack.c.b16 %v2292, %v2291
    %v2308 = vpack.c.b16 %v2294, %v2293
    %v2309 = vpack.c.b16 %v2296, %v2295
    %v2310 = vpack.c.b16 %v2298, %v2297
    %v2311 = vpack.c.b16 %v2300, %v2299
    %v2312 = vpack.c.b16 %v2302, %v2301
    %v2313 = vpack.c.b16 %v2304, %v2303
    %v2314 = vpack.c.b16 %v2306, %v2305
    %2323 = vmatprep.subr.bf16.mxu0 0
    %2324 = vmatpush1.bf16.msra.mxu0 %v2314
    %2325 = vmatprep.subr.bf16.mxu0 0
    %2326 = vmatpush1.bf16.msra.mxu0 %v2313
    %2327 = vmatprep.subr.bf16.mxu0 0
    %2328 = vmatpush1.bf16.msra.mxu0 %v2312
    %2329 = vmatprep.subr.bf16.mxu0 0
    %2330 = vmatpush1.bf16.msra.mxu0 %v2311
    %2331 = vmatprep.subr.bf16.mxu0 0
    %2332 = vmatpush1.bf16.msra.mxu0 %v2310
    %2333 = vmatprep.subr.bf16.mxu0 0
    %2334 = vmatpush1.bf16.msra.mxu0 %v2309
    %2335 = vmatprep.subr.bf16.mxu0 0
    %2336 = vmatpush1.bf16.msra.mxu0 %v2308
    %2337 = vmatprep.subr.bf16.mxu0 0
    %2338 = vmatpush1.bf16.msra.mxu0 %v2307
    %2339 = vmatprep.subr.bf16.mxu0 0
    %2340 = vmatpush2.bf16.msra.mxu0 0
    %2341 = vmatprep.subr.bf16.mxu0 0
    %2342 = vmatpush2.bf16.msra.mxu0 0
    %2343 = vmatprep.subr.bf16.mxu0 0
    %2344 = vmatpush2.bf16.msra.mxu0 0
    %2345 = vmatprep.subr.bf16.mxu0 0
    %2346 = vmatpush2.bf16.msra.mxu0 0
    %2347 = vmatprep.subr.bf16.mxu0 0
    %2348 = vmatpush2.bf16.msra.mxu0 0
    %2349 = vmatprep.subr.bf16.mxu0 0
    %2350 = vmatpush2.bf16.msra.mxu0 0
    %2351 = vmatprep.subr.bf16.mxu0 0
    %2352 = vmatpush2.bf16.msra.mxu0 0
    %2353 = vmatprep.subr.bf16.mxu0 0
    %2354 = vmatpush2.bf16.msra.mxu0 0
    %2355 = vmatprep.mubr.bf16.mxu0 0
    %2356 = vmatmul.mubr.bf16.gmra.mxu0 %v2251
    %v2357 = vpop.f32.mrf.mxu0
    %v2358 = vadd.f32 %v2273, %v2357
    %v2359 = vpop.f32.mrf.mxu0
    %v2360 = vpop.f32.mrf.mxu0
    %v2361 = vpop.f32.mrf.mxu0
    %2362 = vdwg.mxu0
    %v2363 = vmax.f32 %v2358, 0.0
    %v2364 = vpack.c.bf16 %v2363, %v2363
    %v2365 = vld [vmem:[#allocation10] sm:$0xf]
    %v2366 = vld [vmem:[#allocation10 + $0x4] sm:$0xf]
    %v2367 = vld [vmem:[#allocation10 + $0x8] sm:$0xf]
    %v2368 = vld [vmem:[#allocation10 + $0xc] sm:$0xf]
    %v2369 = vld [vmem:[#allocation10 + $0x10] sm:$0xf]
    %v2370 = vld [vmem:[#allocation10 + $0x14] sm:$0xf]
    %v2371 = vld [vmem:[#allocation10 + $0x18] sm:$0xf]
    %v2372 = vld [vmem:[#allocation10 + $0x1c] sm:$0xf]
    %v2373 = vld [vmem:[#allocation10 + $0x20] sm:$0xf]
    %v2374 = vld [vmem:[#allocation10 + $0x24] sm:$0xf]
    %v2375 = vld [vmem:[#allocation10 + $0x28] sm:$0xf]
    %v2376 = vld [vmem:[#allocation10 + $0x2c] sm:$0xf]
    %v2377 = vld [vmem:[#allocation10 + $0x30] sm:$0xf]
    %v2378 = vld [vmem:[#allocation10 + $0x34] sm:$0xf]
    %v2379 = vld [vmem:[#allocation10 + $0x38] sm:$0xf]
    %v2380 = vld [vmem:[#allocation10 + $0x3c] sm:$0xf]
    %v2381 = vld [vmem:[%s12] sm:$0x1]
    %v2383 = vlaneseq
    %v2384 = vshrl.u32 %v2383, 7
    %v2385 = vsub.s32 0, %v2384
    %v2386 = vrot.slane %v2381, %v2385
    %v2404 = vunpack.c.l.b16 %v2365
    %v2405 = vunpack.c.l.b16 %v2366
    %v2406 = vunpack.c.l.b16 %v2367
    %v2407 = vunpack.c.l.b16 %v2368
    %v2408 = vunpack.c.l.b16 %v2369
    %v2409 = vunpack.c.l.b16 %v2370
    %v2410 = vunpack.c.l.b16 %v2371
    %v2411 = vunpack.c.l.b16 %v2372
    %v2412 = vunpack.c.l.b16 %v2373
    %v2413 = vunpack.c.l.b16 %v2374
    %v2414 = vunpack.c.l.b16 %v2375
    %v2415 = vunpack.c.l.b16 %v2376
    %v2416 = vunpack.c.l.b16 %v2377
    %v2417 = vunpack.c.l.b16 %v2378
    %v2418 = vunpack.c.l.b16 %v2379
    %v2419 = vunpack.c.l.b16 %v2380
    %v2420 = vpack.c.b16 %v2405, %v2404
    %v2421 = vpack.c.b16 %v2407, %v2406
    %v2422 = vpack.c.b16 %v2409, %v2408
    %v2423 = vpack.c.b16 %v2411, %v2410
    %v2424 = vpack.c.b16 %v2413, %v2412
    %v2425 = vpack.c.b16 %v2415, %v2414
    %v2426 = vpack.c.b16 %v2417, %v2416
    %v2427 = vpack.c.b16 %v2419, %v2418
    %2436 = vmatprep.subr.bf16.mxu0 0
    %2437 = vmatpush1.bf16.msra.mxu0 %v2427
    %2438 = vmatprep.subr.bf16.mxu0 0
    %2439 = vmatpush1.bf16.msra.mxu0 %v2426
    %2440 = vmatprep.subr.bf16.mxu0 0
    %2441 = vmatpush1.bf16.msra.mxu0 %v2425
    %2442 = vmatprep.subr.bf16.mxu0 0
    %2443 = vmatpush1.bf16.msra.mxu0 %v2424
    %2444 = vmatprep.subr.bf16.mxu0 0
    %2445 = vmatpush1.bf16.msra.mxu0 %v2423
    %2446 = vmatprep.subr.bf16.mxu0 0
    %2447 = vmatpush1.bf16.msra.mxu0 %v2422
    %2448 = vmatprep.subr.bf16.mxu0 0
    %2449 = vmatpush1.bf16.msra.mxu0 %v2421
    %2450 = vmatprep.subr.bf16.mxu0 0
    %2451 = vmatpush1.bf16.msra.mxu0 %v2420
    %2452 = vmatprep.subr.bf16.mxu0 0
    %2453 = vmatpush2.bf16.msra.mxu0 0
    %2454 = vmatprep.subr.bf16.mxu0 0
    %2455 = vmatpush2.bf16.msra.mxu0 0
    %2456 = vmatprep.subr.bf16.mxu0 0
    %2457 = vmatpush2.bf16.msra.mxu0 0
    %2458 = vmatprep.subr.bf16.mxu0 0
    %2459 = vmatpush2.bf16.msra.mxu0 0
    %2460 = vmatprep.subr.bf16.mxu0 0
    %2461 = vmatpush2.bf16.msra.mxu0 0
    %2462 = vmatprep.subr.bf16.mxu0 0
    %2463 = vmatpush2.bf16.msra.mxu0 0
    %2464 = vmatprep.subr.bf16.mxu0 0
    %2465 = vmatpush2.bf16.msra.mxu0 0
    %2466 = vmatprep.subr.bf16.mxu0 0
    %2467 = vmatpush2.bf16.msra.mxu0 0
    %2468 = vmatprep.mubr.bf16.mxu0 0
    %2469 = vmatmul.mubr.bf16.gmra.mxu0 %v2364
    %v2470 = vpop.f32.mrf.mxu0
    %v2471 = vadd.f32 %v2386, %v2470
    %v2472 = vpop.f32.mrf.mxu0
    %v2473 = vpop.f32.mrf.mxu0
    %v2474 = vpop.f32.mrf.mxu0
    %2475 = vdwg.mxu0
    %v2476 = vmax.f32 %v2471, 0.0
    %v2477 = vlaneseq
    %v2478 = vand.u32 %v2477, 127
    %vm2479 = vcmp.lt.s32.totalorder %v2478, 10
    %v2480 = vsel %vm2479, %v2476, -1e+30
    %2481 = vmax.xlane.f32.xlu0 %v2480
    %v2482 = vpop.xlane.xlu0 %2481
    %v2483 = vsub.f32 %v2480, %v2482
    %v2484 = vmul.f32 %v2483, 1.442695
    %v2485 = vpow.pop %v2484
    %2486 = vadd.xlane.f32.xlu0 %v2485
    %v2487 = vpop.xlane.xlu0 %2486
    %v2488 = vlog2.pop %v2487
    %v2489 = vmul.f32 %v2488, 0.6931472
    %v2490 = vadd.f32 %v2489, %v2482
    %v2491 = vsub.f32 %v2480, %v2490
    %2492 = vst [vmem:[%s13] sm:$0xff] %v2491
    // Predicated region
    $region78: #{ann_hist_forward.1} parent=1 // pred_check
      _
    $region79: #{ann_hist_forward.1} parent=1 // pred_check_branch
      %2494 = sbr.rel (0) target = $region81
    $region80: #{ann_hist_forward.1} parent=1 // pred_region
      _
    $region81: #{ann_hist_forward.1} parent=1 // pred_fallthru
      _
    // Predicated region
    $region82: #{ann_hist_forward.1} parent=1 // pred_check
      _
    $region83: #{ann_hist_forward.1} parent=1 // pred_check_branch
      %2496 = sbr.rel (0) target = $region85
    $region84: #{ann_hist_forward.1} parent=1 // pred_region
      _
    $region85: #{ann_hist_forward.1} parent=1 // pred_fallthru
      _
    %2497 = vsyncpa [#allocation3], 1
    %2498 = vsyncpa [#allocation5], 1
    %2499 = vsyncpa [#allocation8], 1
    %2500 = vsyncpa [#allocation11], 1

</llo_original>
